<compile_context>
chip_gen: v7x
topology: tpu7x:2x2x1
jax: 0.10.0
libtpu: 0.0.40
codegen_flags: <defaults>
</compile_context>

<pallas_src>
import math

import jax
import jax.numpy as jnp
from jax import lax
from jax.experimental import pallas as pl
from jax.experimental.pallas import tpu as pltpu


def _round_up(x, m):
    return (x + m - 1) // m * m


def gcn_fused_kernel(a_ref, x_ref, w_ref, b_ref, o_ref):
    """out[i, :] += A[i, k] @ (x[k] @ W.T + b) over the K grid axis."""
    @pl.when(pl.program_id(1) == 0)
    def _():
        o_ref[...] = jnp.zeros_like(o_ref)

    # h_k = x_k @ W.T + b   (contract on n_in directly; f32 accumulation on MXU)
    h = lax.dot_general(
        x_ref[...], w_ref[...],
        dimension_numbers=(((1,), (1,)), ((), ())),
        preferred_element_type=jnp.float32,
    ) + b_ref[...]

    # Accumulate directly into the resident f32 output block.
    o_ref[...] += jnp.dot(
        a_ref[...], h.astype(a_ref.dtype), preferred_element_type=jnp.float32
    )


def gcn_layer(x, A, W, b, *, tile_m=512, tile_k=512, compute_dtype=jnp.bfloat16):
    """out = A @ (x @ W.T + b)  with A realized densely."""
    N, n_in = x.shape
    n_out = W.shape[0]
    assert A.shape == (N, N)

    n_out_pad = _round_up(n_out, 128)          # lane-dense output width
    tile_m = min(tile_m, _round_up(N, 128))
    tile_k = min(tile_k, _round_up(N, 128))
    Nm = _round_up(N, tile_m)                  # padded rows of A / output
    Nk = _round_up(N, tile_k)                  # padded cols of A / rows of x

    # A is the dominant HBM stream: skip any pad/cast copy when the caller already
    # supplies it tile-aligned and in compute_dtype.
    if A.shape == (Nm, Nk) and A.dtype == jnp.dtype(compute_dtype):
        A_p = A
    else:
        A_p = jnp.pad(A, ((0, Nm - N), (0, Nk - N))).astype(compute_dtype)

    # x/W/b are tiny; cast to compute_dtype so both matmuls run at bf16 MXU rate.
    x_p = jnp.pad(x, ((0, Nk - N), (0, 0))).astype(compute_dtype)
    W_p = jnp.pad(W, ((0, n_out_pad - n_out), (0, 0))).astype(compute_dtype)
    b_p = jnp.pad(b, (0, n_out_pad - n_out)).astype(jnp.float32).reshape(1, n_out_pad)
    # Padded W rows / b entries are 0 -> padded h columns are 0; padded A rows/cols
    # are 0 -> padded x rows (whose h would be `b`) never contribute. The
    # [:N, :n_out] slice of the result is exact.

    elem_c = jnp.dtype(compute_dtype).itemsize
    n_row_tiles = Nm // tile_m

    # Advisory cost (counts the per-row-tile re-read of x and the h recompute).
    cost = pl.CostEstimate(
        flops=2 * Nm * Nk * n_out_pad + n_row_tiles * 2 * Nk * n_in * n_out_pad,
        transcendentals=0,
        bytes_accessed=(
            Nm * Nk * elem_c                      # A, streamed once
            + n_row_tiles * Nk * n_in * elem_c    # x, re-read per row tile (tiny)
            + Nm * n_out_pad * 4                  # f32 output
        ),
    )

    # VMEM budget derived from actual double-buffered tile footprint; capped so it
    # leaves headroom on v7x (64 MiB/TC).
    footprint = (
        2 * tile_m * tile_k * elem_c      # A tile (double-buffered)
        + 2 * tile_k * n_in * elem_c      # x tile
        + 2 * n_out_pad * n_in * elem_c   # W
        + 2 * n_out_pad * 4               # b
        + 2 * tile_m * n_out_pad * 4      # f32 output tile
    )
    vmem_limit = min(48 * 1024 * 1024, max(32 * 1024 * 1024, 2 * footprint))

    out = pl.pallas_call(
        gcn_fused_kernel,
        out_shape=jax.ShapeDtypeStruct((Nm, n_out_pad), jnp.float32),
        grid=(n_row_tiles, Nk // tile_k),
        in_specs=[
            pl.BlockSpec((tile_m, tile_k), lambda i, k: (i, k)),      # A tile
            pl.BlockSpec((tile_k, n_in), lambda i, k: (k, 0)),        # x K-tile
            pl.BlockSpec((n_out_pad, n_in), lambda i, k: (0, 0)),     # W (resident)
            pl.BlockSpec((1, n_out_pad), lambda i, k: (0, 0)),        # b (resident)
        ],
        out_specs=pl.BlockSpec((tile_m, n_out_pad), lambda i, k: (i, 0)),
        compiler_params=pltpu.CompilerParams(
            dimension_semantics=("parallel", "arbitrary"),
            vmem_limit_bytes=vmem_limit,
        ),
        cost_estimate=cost,
    )(A_p, x_p, W_p, b_p)

    return out[:N, :n_out]


def reference(x, A, W, b):
    return A @ (x @ W.T + b)


if __name__ == "__main__":
    key = jax.random.PRNGKey(0)
    N, n_in, n_out = 1024, 32, 64

    k_x, k_a, k_m, k_w, k_b = jax.random.split(key, 5)

    # Deterministic parameter init matching GCN_layer.__init__:
    # xavier_uniform_(weight, gain=1.414); default nn.Linear bias init.
    gain = 1.414
    limit_w = gain * math.sqrt(6.0 / (n_in + n_out))
    W = jax.random.uniform(k_w, (n_out, n_in), jnp.float32, -limit_w, limit_w)
    limit_b = 1.0 / math.sqrt(n_in)
    b = jax.random.uniform(k_b, (n_out,), jnp.float32, -limit_b, limit_b)

    # Inputs: node features + sparse-ish weighted adjacency (densified).
    x = jax.random.normal(k_x, (N, n_in), jnp.float32)
    A_dense = jax.random.normal(k_a, (N, N), jnp.float32)
    mask = jax.random.bernoulli(k_m, 0.1, (N, N)).astype(jnp.float32)
    A = A_dense * mask

    ref = reference(x, A, W, b)
    ref_scale = jnp.max(jnp.abs(ref))

    # Full-precision path (A stays f32, no pad needed -> zero-copy A): strict check.
    out_f32 = jax.block_until_ready(gcn_layer(x, A, W, b, compute_dtype=jnp.float32))
    assert out_f32.shape == (N, n_out)
    rel_f32 = jnp.max(jnp.abs(out_f32 - ref)) / ref_scale
    assert rel_f32 < 1e-3, f"f32 path relative error too large: {rel_f32}"

    # Default path: A supplied in bf16 (no pad/cast prepass), f32 accumulation.
    A_bf16 = A.astype(jnp.bfloat16)
    out_bf16 = jax.block_until_ready(gcn_layer(x, A_bf16, W, b))
    assert out_bf16.shape == (N, n_out)
    rel_bf16 = jnp.max(jnp.abs(out_bf16 - ref)) / ref_scale
    assert rel_bf16 < 5e-2, f"bf16 path relative error too large: {rel_bf16}"

    # Ragged / padded shapes (exercise the padding path), strict f32 check.
    N2, n_out2 = 300, 50
    x2 = jax.random.normal(k_x, (N2, n_in), jnp.float32)
    A2 = jax.random.normal(k_a, (N2, N2), jnp.float32)
    W2 = W[:n_out2]
    b2 = b[:n_out2]
    ref2 = reference(x2, A2, W2, b2)
    out2 = jax.block_until_ready(gcn_layer(x2, A2, W2, b2, compute_dtype=jnp.float32))
    assert out2.shape == (N2, n_out2)
    rel2 = jnp.max(jnp.abs(out2 - ref2)) / jnp.max(jnp.abs(ref2))
    assert rel2 < 1e-3, f"ragged f32 path relative error too large: {rel2}"

    print("KERNEL_OK")
</pallas_src>

<mosaic_0001>
module attributes {stable_mosaic.version = 11 : i64} {
  func.func @gcn_fused_kernel(%arg0: i32, %arg1: i32, %arg2: memref<512x512xf32, #tpu.memory_space<vmem>>, %arg3: memref<512x32xf32, #tpu.memory_space<vmem>>, %arg4: memref<128x32xf32, #tpu.memory_space<vmem>>, %arg5: memref<1x128xf32, #tpu.memory_space<vmem>>, %arg6: memref<512x128xf32, #tpu.memory_space<vmem>>) attributes {dimension_semantics = [#tpu.dimension_semantics<parallel>, #tpu.dimension_semantics<arbitrary>], iteration_bounds = array<i64: 2, 2>, scalar_prefetch = 0 : i64, scratch_operands = 0 : i64, tpu.core_type = #tpu.core_type<tc>, window_params = [{transform_indices = @transform_0, window_bounds = array<i64: 512, 512>}, {transform_indices = @transform_1, window_bounds = array<i64: 512, 32>}, {pipeline_mode = #tpu.pipeline_mode<synchronous>, transform_indices = @transform_2, window_bounds = array<i64: 128, 32>}, {pipeline_mode = #tpu.pipeline_mode<synchronous>, transform_indices = @transform_3, window_bounds = array<i64: 1, 128>}, {transform_indices = @transform_4, window_bounds = array<i64: 512, 128>}]} {
    %c0_i32 = arith.constant 0 : i32
    %0 = arith.cmpi eq, %arg1, %c0_i32 : i32
    %1 = arith.extui %0 : i1 to i32
    %c0_i32_0 = arith.constant 0 : i32
    %2 = arith.cmpi ne, %1, %c0_i32_0 : i32
    scf.if %2 {
      %cst_13 = arith.constant 0.000000e+00 : f32
      %14 = vector.broadcast %cst_13 : f32 to vector<512x128xf32>
      %c0_14 = arith.constant 0 : index
      %c0_15 = arith.constant 0 : index
      %15 = vector.load %arg6[%c0_14, %c0_15] : memref<512x128xf32, #tpu.memory_space<vmem>>, vector<512x128xf32>
      tpu.vector_store %arg6[%c0_14, %c0_15], %14 {strides = array<i32>} : memref<512x128xf32, #tpu.memory_space<vmem>>, vector<512x128xf32>,
    } else {
    }
    %c0 = arith.constant 0 : index
    %c0_1 = arith.constant 0 : index
    %3 = vector.load %arg3[%c0, %c0_1] : memref<512x32xf32, #tpu.memory_space<vmem>>, vector<512x32xf32>
    %c0_2 = arith.constant 0 : index
    %c0_3 = arith.constant 0 : index
    %4 = vector.load %arg4[%c0_2, %c0_3] : memref<128x32xf32, #tpu.memory_space<vmem>>, vector<128x32xf32>
    %cst = arith.constant dense<0.000000e+00> : vector<512x128xf32>
    %5 = tpu.matmul %3, %4, %cst {dimension_numbers = #tpu.dot_dimension_numbers<[1], [1], [0], [0], [0, 0, 1, 0], [], []>} : vector<512x32xf32>, vector<128x32xf32>, vector<512x128xf32> -> vector<512x128xf32>
    %c0_4 = arith.constant 0 : index
    %c0_5 = arith.constant 0 : index
    %6 = vector.load %arg5[%c0_4, %c0_5] : memref<1x128xf32, #tpu.memory_space<vmem>>, vector<1x128xf32>
    %7 = vector.broadcast %6 : vector<1x128xf32> to vector<512x128xf32>
    %8 = arith.addf %5, %7 : vector<512x128xf32>
    %c0_6 = arith.constant 0 : index
    %c0_7 = arith.constant 0 : index
    %9 = vector.load %arg6[%c0_6, %c0_7] : memref<512x128xf32, #tpu.memory_space<vmem>>, vector<512x128xf32>
    %c0_8 = arith.constant 0 : index
    %c0_9 = arith.constant 0 : index
    %10 = vector.load %arg2[%c0_8, %c0_9] : memref<512x512xf32, #tpu.memory_space<vmem>>, vector<512x512xf32>
    %cst_10 = arith.constant dense<0.000000e+00> : vector<512x128xf32>
    %11 = tpu.matmul %10, %8, %cst_10 {dimension_numbers = #tpu.dot_dimension_numbers<[1], [0], [0], [1], [0, 0, 1, 1], [], []>} : vector<512x512xf32>, vector<512x128xf32>, vector<512x128xf32> -> vector<512x128xf32>
    %12 = arith.addf %9, %11 : vector<512x128xf32>
    %c0_11 = arith.constant 0 : index
    %c0_12 = arith.constant 0 : index
    %13 = vector.load %arg6[%c0_11, %c0_12] : memref<512x128xf32, #tpu.memory_space<vmem>>, vector<512x128xf32>
    tpu.vector_store %arg6[%c0_11, %c0_12], %12 {strides = array<i32>} : memref<512x128xf32, #tpu.memory_space<vmem>>, vector<512x128xf32>,
    return
  }
  func.func @transform_0(%arg0: i32, %arg1: i32) -> (i32, i32) {
    %c0_i32 = arith.constant 0 : i32
    return %arg0, %arg1 : i32, i32
  }
  func.func @transform_1(%arg0: i32, %arg1: i32) -> (i32, i32) {
    %c0_i32 = arith.constant 0 : i32
    %c0_i32_0 = arith.constant 0 : i32
    return %arg1, %c0_i32 : i32, i32
  }
  func.func @transform_2(%arg0: i32, %arg1: i32) -> (i32, i32) {
    %c0_i32 = arith.constant 0 : i32
    %c0_i32_0 = arith.constant 0 : i32
    %c0_i32_1 = arith.constant 0 : i32
    return %c0_i32, %c0_i32_0 : i32, i32
  }
  func.func @transform_3(%arg0: i32, %arg1: i32) -> (i32, i32) {
    %c0_i32 = arith.constant 0 : i32
    %c0_i32_0 = arith.constant 0 : i32
    %c0_i32_1 = arith.constant 0 : i32
    return %c0_i32, %c0_i32_0 : i32, i32
  }
  func.func @transform_4(%arg0: i32, %arg1: i32) -> (i32, i32) {
    %c0_i32 = arith.constant 0 : i32
    %c0_i32_0 = arith.constant 0 : i32
    return %arg0, %c0_i32 : i32, i32
  }
}

</mosaic_0001>

<llo_original>
// kernel: tpu_custom_call.1
$region0: #{tpu_custom_call.1}
  #allocation0 [shape = 'u32[]', space=smem, size = 0x4, offset = 0x4, fixed_abs, tag = 'smem constant byte address 0x4 - core index']
  #allocation1 [shape = 'u32[144,128]{1,0:T(1,128)}', space=vmem, size = 0x12000, scoped, tag = 'internal scratch']
  %s0 = inlined_call_operand.hbm [shape: f32[1024,1024], index: 0, kind: input, shape index: {}]
  %s1 = inlined_call_operand.vmem [shape: f32[1024,32], index: 1, kind: input, shape index: {}]
  %s2 = inlined_call_operand.vmem [shape: f32[128,32], index: 2, kind: input, shape index: {}]
  %s3 = inlined_call_operand.hbm [shape: f32[1,128], index: 3, kind: input, shape index: {}]
  %s4 = inlined_call_operand.hbm [shape: f32[1024,128], index: 4, kind: output, shape index: {}]
  %s5 = sld [smem:[#allocation0]]
  $region61: #{tpu_custom_call.1} parent=0
    _
  %s7 = ssub.s32 1, %s5
  %s8 = scalar_select 0, %s7, %s5
  $region1: #{tpu_custom_call.1} parent=0
    #allocation2 [shape = 'u8[2097152]{0}', space=vmem, size = 0x200000, scoped, tag = 'input window, operand 0']
    #allocation3 [shape = 's32[2]{0}', space=sflag, size = 0x8, scoped, tag = 'scoped memory for tpu_custom_call.1']
    #allocation4 [shape = 's32[2]{0}', space=sflag, size = 0x8, scoped, tag = 'scoped memory for tpu_custom_call.1']
    #allocation5 [shape = 'u8[512]{0}', space=vmem, size = 0x400, scoped, tag = 'input window, operand 3, single buffered']
    #allocation6 [shape = 's32[1]{0}', space=sflag, size = 0x4, scoped, tag = 'scoped memory for tpu_custom_call.1']
    #allocation7 [shape = 'u8[524288]{0}', space=vmem, size = 0x80000, scoped, tag = 'output window, operand 0']
    %9 = vsyncpa [#allocation3], 0
    %s10 = scalar_lea.sflag [#allocation3], 1
    %11 = vsyncpa %s10, 0
    %12 = vsyncpa [#allocation6], 0
    %13 = vsyncpa [#allocation4], 0
    %s14 = scalar_lea.sflag [#allocation4], 1
    %15 = vsyncpa %s14, 0
    loop: start=0, step=1, limit=6
    $region2: #{tpu_custom_call.1} parent=1 // loop_pre_header
      _
    $region3: #{tpu_custom_call.1} parent=1 // loop_header
      %s17 = sphi 0, %s21
      %p18 = scmp.ge.s32.totalorder %s17, 6
      %s24 = sphi 0, %s36
      %s25 = sphi 0, %s32
      %s26 = sphi 0, %s24
      %s27 = sphi 0, %s25
      %s28 = sphi 0, %s26
      %s29 = sphi 0, %s27
      %s41 = sphi 0, %s43
      %s44 = sphi 0, %s41
      %s45 = sphi 0, %s44
      %s61 = sphi 0, %s45
      %s67 = sphi 0, %s69
      %s70 = sphi 0, %s67
      %s71 = sphi 0, %s70
      %s87 = sphi 0, %s71
      %s91 = sphi 0, %s91
      %s93 = sphi 0, %s91
      %s94 = sphi 0, %s93
      %s108 = sphi 0, %s94
      %s112 = sphi 0, %s112
      %s114 = sphi 0, %s112
      %s115 = sphi 0, %s114
      %s129 = sphi 0, %s115
      %s135 = sphi 0, %s137
      %s138 = sphi 0, %s135
      %s139 = sphi 0, %s138
      %s155 = sphi 0, %s139
    $region4: #{tpu_custom_call.1} parent=1 // loop_header_branch
      %20 = sbr.rel (%p18) target = $region8
    $region5: #{tpu_custom_call.1} parent=1 // loop_body
      %s22 = ssub.s32 %s17, 1
      %s23 = ssub.s32 %s17, 2
      %s30 = sadd.s32 1, %s25
      %p31 = scmp.ge.s32.totalorder %s30, 2
      %s32 = scalar_select %p31, 0, %s30
      %s33 = sadd.s32 1, %s24
      %s34 = scalar_select %p31, %s33, %s24
      %p35 = scmp.ge.s32.totalorder %s34, 2
      %s36 = scalar_select %p35, 0, %s34
      %s37 = ssub.s32 %s24, %s36
      %s38 = ssub.s32 %s25, %s32
      %s39 = sor.u32 %s37, %s38
      %p40 = scmp.eq.s32.totalorder %s39, 0
      %s42 = sadd.s32 %s41, 1
      %s43 = scalar_select %p40, %s41, %s42
      %p46 = pneg %p40
      %p47 = scmp.eq.s32.totalorder %s17, 3
      %p48 = por %p46, %p47
      %p49 = scmp.ne.s32.totalorder %s41, %s44
      %p50 = scmp.eq.s32.totalorder %s17, 0
      %p51 = por %p49, %p50
      %p52 = scmp.ne.s32.totalorder %s41, %s44
      %p53 = scmp.eq.s32.totalorder %s22, 3
      %p54 = por %p52, %p53
      %p55 = scmp.ne.s32.totalorder %s44, %s45
      %p56 = scmp.eq.s32.totalorder %s22, 0
      %p57 = por %p55, %p56
      %p58 = scmp.ne.s32.totalorder %s44, %s45
      %p59 = scmp.eq.s32.totalorder %s23, 3
      %p60 = por %p58, %p59
      %p62 = scmp.ne.s32.totalorder %s45, %s61
      %p63 = scmp.eq.s32.totalorder %s23, 0
      %p64 = por %p62, %p63
      %s65 = ssub.s32 %s25, %s32
      %p66 = scmp.eq.s32.totalorder %s65, 0
      %s68 = sadd.s32 %s67, 1
      %s69 = scalar_select %p66, %s67, %s68
      %p72 = pneg %p66
      %p73 = scmp.eq.s32.totalorder %s17, 3
      %p74 = por %p72, %p73
      %p75 = scmp.ne.s32.totalorder %s67, %s70
      %p76 = scmp.eq.s32.totalorder %s17, 0
      %p77 = por %p75, %p76
      %p78 = scmp.ne.s32.totalorder %s67, %s70
      %p79 = scmp.eq.s32.totalorder %s22, 3
      %p80 = por %p78, %p79
      %p81 = scmp.ne.s32.totalorder %s70, %s71
      %p82 = scmp.eq.s32.totalorder %s22, 0
      %p83 = por %p81, %p82
      %p84 = scmp.ne.s32.totalorder %s70, %s71
      %p85 = scmp.eq.s32.totalorder %s23, 3
      %p86 = por %p84, %p85
      %p88 = scmp.ne.s32.totalorder %s71, %s87
      %p89 = scmp.eq.s32.totalorder %s23, 0
      %p90 = por %p88, %p89
      %s92 = sadd.s32 %s91, 1
      %p95 = scmp.eq.s32.totalorder %s17, 3
      %p96 = scmp.ne.s32.totalorder %s91, %s93
      %p97 = scmp.eq.s32.totalorder %s17, 0
      %p98 = por %p96, %p97
      %p99 = scmp.ne.s32.totalorder %s91, %s93
      %p100 = scmp.eq.s32.totalorder %s22, 3
      %p101 = por %p99, %p100
      %p102 = scmp.ne.s32.totalorder %s93, %s94
      %p103 = scmp.eq.s32.totalorder %s22, 0
      %p104 = por %p102, %p103
      %p105 = scmp.ne.s32.totalorder %s93, %s94
      %p106 = scmp.eq.s32.totalorder %s23, 3
      %p107 = por %p105, %p106
      %p109 = scmp.ne.s32.totalorder %s94, %s108
      %p110 = scmp.eq.s32.totalorder %s23, 0
      %p111 = por %p109, %p110
      %s113 = sadd.s32 %s112, 1
      %p116 = scmp.eq.s32.totalorder %s17, 3
      %p117 = scmp.ne.s32.totalorder %s112, %s114
      %p118 = scmp.eq.s32.totalorder %s17, 0
      %p119 = por %p117, %p118
      %p120 = scmp.ne.s32.totalorder %s112, %s114
      %p121 = scmp.eq.s32.totalorder %s22, 3
      %p122 = por %p120, %p121
      %p123 = scmp.ne.s32.totalorder %s114, %s115
      %p124 = scmp.eq.s32.totalorder %s22, 0
      %p125 = por %p123, %p124
      %p126 = scmp.ne.s32.totalorder %s114, %s115
      %p127 = scmp.eq.s32.totalorder %s23, 3
      %p128 = por %p126, %p127
      %p130 = scmp.ne.s32.totalorder %s115, %s129
      %p131 = scmp.eq.s32.totalorder %s23, 0
      %p132 = por %p130, %p131
      %s133 = ssub.s32 %s24, %s36
      %p134 = scmp.eq.s32.totalorder %s133, 0
      %s136 = sadd.s32 %s135, 1
      %s137 = scalar_select %p134, %s135, %s136
      %p140 = pneg %p134
      %p141 = scmp.eq.s32.totalorder %s17, 3
      %p142 = por %p140, %p141
      %p143 = scmp.ne.s32.totalorder %s135, %s138
      %p144 = scmp.eq.s32.totalorder %s17, 0
      %p145 = por %p143, %p144
      %p146 = scmp.ne.s32.totalorder %s135, %s138
      %p147 = scmp.eq.s32.totalorder %s22, 3
      %p148 = por %p146, %p147
      %p149 = scmp.ne.s32.totalorder %s138, %s139
      %p150 = scmp.eq.s32.totalorder %s22, 0
      %p151 = por %p149, %p150
      %p152 = scmp.ne.s32.totalorder %s138, %s139
      %p153 = scmp.eq.s32.totalorder %s23, 3
      %p154 = por %p152, %p153
      %p156 = scmp.ne.s32.totalorder %s139, %s155
      %p157 = scmp.eq.s32.totalorder %s23, 0
      %p158 = por %p156, %p157
      %p159 = scmp.le.s32.totalorder 1, %s17
      %p160 = scmp.lt.s32.totalorder %s17, 5
      %p161 = pnand %p159, %p160
      %p162 = pneg %p161
      // Predicated region
      $region9: #{tpu_custom_call.1} parent=5 // pred_check
        _
      $region10: #{tpu_custom_call.1} parent=5 // pred_check_branch
        %164 = sbr.rel (%p161) target = $region12
      $region11: #{tpu_custom_call.1} parent=5 // pred_region
        %s165 = ssub.s32 %s17, 1
        // Predicated region
        $region13: #{tpu_custom_call.1} parent=11 // pred_check
          %p166 = pneg %p104
        $region14: #{tpu_custom_call.1} parent=11 // pred_check_branch
          %168 = sbr.rel (%p166) target = $region16
        $region15: #{tpu_custom_call.1} parent=11 // pred_region
          _
        $region16: #{tpu_custom_call.1} parent=11 // pred_fallthru
          _
        // Predicated region
        $region17: #{tpu_custom_call.1} parent=11 // pred_check
          %p169 = pneg %p125
        $region18: #{tpu_custom_call.1} parent=11 // pred_check_branch
          %171 = sbr.rel (%p169) target = $region20
        $region19: #{tpu_custom_call.1} parent=11 // pred_region
          %s173 = ssub.s32 16, 16
          %174 = vsyncadd [#allocation6], %s173
          %s176 = sshll.u32 [#allocation5], 4
          %s177 = int_to_ptr.vmem [resolvable:$true] %s176
          %179 = dma.hbm_to_vmem [thread:$0]  %s3, 16, %s177, [#allocation6]
        $region20: #{tpu_custom_call.1} parent=11 // pred_fallthru
          _
      $region12: #{tpu_custom_call.1} parent=5 // pred_fallthru
        _
      %p180 = scmp.lt.s32.totalorder %s17, 4
      // Predicated region
      $region21: #{tpu_custom_call.1} parent=5 // pred_check
        %p181 = pneg %p180
      $region22: #{tpu_custom_call.1} parent=5 // pred_check_branch
        %183 = sbr.rel (%p181) target = $region24
      $region23: #{tpu_custom_call.1} parent=5 // pred_region
        // Predicated region
        $region25: #{tpu_custom_call.1} parent=23 // pred_check
          %p184 = pneg %p51
        $region26: #{tpu_custom_call.1} parent=23 // pred_check_branch
          %186 = sbr.rel (%p184) target = $region28
        $region27: #{tpu_custom_call.1} parent=23 // pred_region
          %s187 = sand.u32 %s41, 1
          %s188 = scalar_lea.sflag [#allocation3], %s187
          %s189 = sand.u32 %s41, 1
          %s190 = smul.addr %s189, 2048
          %s191 = scalar_lea.vmem [#allocation2], %s190
          %s192 = smul.u32 64, %s24
          %s193 = smul.u32 4, %s25
          %s195 = ssub.s32 32768, 32768
          %196 = vsyncadd %s188, %s195
          %s197 = smul.addr %s192, 8
          %s198 = sadd.s32 %s193, %s197
          %s199 = smul.addr %s198, 128
          %s200 = scalar_lea.hbm %s0, %s199
          %s201 = sshll.u32 %s191, 4
          %s202 = int_to_ptr.vmem [resolvable:$true] %s201
          %207 = dma.hbm_to_vmem [thread:$0]  %s200, 32768, %s202, %s188, 1024, 512, 32
        $region28: #{tpu_custom_call.1} parent=23 // pred_fallthru
          _
        // Predicated region
        $region29: #{tpu_custom_call.1} parent=23 // pred_check
          %p208 = pneg %p77
        $region30: #{tpu_custom_call.1} parent=23 // pred_check_branch
          %210 = sbr.rel (%p208) target = $region32
        $region31: #{tpu_custom_call.1} parent=23 // pred_region
          %s211 = smul.u32 64, %s25
          %p212 = scmp.lt.s32.totalorder %s211, 127
          %s213 = scalar_select %p212, %s211, 127
          %s214 = smul.addr %s213, 8
          %s215 = scalar_lea.vmem %s1, %s214
          %s216 = smul.u32 64, %s25
        $region32: #{tpu_custom_call.1} parent=23 // pred_fallthru
          _
      $region24: #{tpu_custom_call.1} parent=5 // pred_fallthru
        _
      %p217 = scmp.le.s32.totalorder 1, %s17
      %p218 = scmp.lt.s32.totalorder %s17, 5
      %p219 = pnand %p217, %p218
      %p220 = pneg %p219
      // Predicated region
      $region33: #{tpu_custom_call.1} parent=5 // pred_check
        _
      $region34: #{tpu_custom_call.1} parent=5 // pred_check_branch
        %222 = sbr.rel (%p219) target = $region36
      $region35: #{tpu_custom_call.1} parent=5 // pred_region
        %s223 = ssub.s32 %s17, 1
        %s224 = sand.u32 %s44, 1
        %s225 = scalar_lea.sflag [#allocation3], %s224
        %s226 = sand.u32 %s44, 1
        %s227 = smul.addr %s226, 2048
        %s228 = scalar_lea.vmem [#allocation2], %s227
        // Predicated region
        $region37: #{tpu_custom_call.1} parent=35 // pred_check
          %p229 = pneg %p57
        $region38: #{tpu_custom_call.1} parent=35 // pred_check_branch
          %231 = sbr.rel (%p229) target = $region40
        $region39: #{tpu_custom_call.1} parent=35 // pred_region
          %232 = dma.done %s225, 32768
        $region40: #{tpu_custom_call.1} parent=35 // pred_fallthru
          _
        // Predicated region
        $region41: #{tpu_custom_call.1} parent=35 // pred_check
          %p233 = pneg %p125
        $region42: #{tpu_custom_call.1} parent=35 // pred_check_branch
          %235 = sbr.rel (%p233) target = $region44
        $region43: #{tpu_custom_call.1} parent=35 // pred_region
          %236 = dma.done [#allocation6], 16
        $region44: #{tpu_custom_call.1} parent=35 // pred_fallthru
          _
        %s237 = sand.u32 %s44, 1
        %s238 = scalar_lea.sflag [#allocation3], %s237
        %s239 = sand.u32 %s44, 1
        %s240 = smul.addr %s239, 2048
        %s241 = scalar_lea.vmem [#allocation2], %s240
        %p242 = pneg %p57
        %p243 = pneg %p54
        %s244 = smul.u32 64, %s27
        %p245 = scmp.lt.s32.totalorder %s244, 127
        %s246 = scalar_select %p245, %s244, 127
        %s247 = smul.addr %s246, 8
        %s248 = scalar_lea.vmem %s1, %s247
        %p249 = pneg %p83
        %p250 = pneg %p80
        %p251 = pneg %p104
        %p252 = pneg %p101
        %p253 = pneg %p125
        %p254 = pneg %p122
        %p255 = pneg %p151
        %p256 = pneg %p148
        %s257 = sand.u32 %s138, 1
        %s258 = scalar_lea.sflag [#allocation4], %s257
        %s259 = sand.u32 %s138, 1
        %s260 = smul.addr %s259, 512
        %s261 = scalar_lea.vmem [#allocation7], %s260
        %s262 = smul.u32 64, %s26
        %s263 = smul.u32 4, %s27
        %s264 = smul.u32 64, %s27
        %p265 = scmp.lt.s32.totalorder %s264, 127
        %s266 = scalar_select %p265, %s264, 127
        %s267 = smul.addr %s266, 8
        %s268 = scalar_lea.vmem %s1, %s267
        %s269 = smul.u32 64, %s27
        %s270 = smul.u32 64, %s26
        %p271 = scmp.eq.s32.totalorder %s27, 0
        // Predicated region
        $region45: #{tpu_custom_call.1} parent=35 // pred_check
          %p272 = pneg %p271
        $region46: #{tpu_custom_call.1} parent=35 // pred_check_branch
          %274 = sbr.rel (%p272) target = $region48
        $region47: #{tpu_custom_call.1} parent=35 // pred_region
          %275 = vst [vmem:[%s261] sm:$0xff] 0.0
          %276 = vst [vmem:[%s261 + $0x8] sm:$0xff] 0.0
          %277 = vst [vmem:[%s261 + $0x10] sm:$0xff] 0.0
          %278 = vst [vmem:[%s261 + $0x18] sm:$0xff] 0.0
          %279 = vst [vmem:[%s261 + $0x20] sm:$0xff] 0.0
          %280 = vst [vmem:[%s261 + $0x28] sm:$0xff] 0.0
          %281 = vst [vmem:[%s261 + $0x30] sm:$0xff] 0.0
          %282 = vst [vmem:[%s261 + $0x38] sm:$0xff] 0.0
          %283 = vst [vmem:[%s261 + $0x40] sm:$0xff] 0.0
          %284 = vst [vmem:[%s261 + $0x48] sm:$0xff] 0.0
          %285 = vst [vmem:[%s261 + $0x50] sm:$0xff] 0.0
          %286 = vst [vmem:[%s261 + $0x58] sm:$0xff] 0.0
          %287 = vst [vmem:[%s261 + $0x60] sm:$0xff] 0.0
          %288 = vst [vmem:[%s261 + $0x68] sm:$0xff] 0.0
          %289 = vst [vmem:[%s261 + $0x70] sm:$0xff] 0.0
          %290 = vst [vmem:[%s261 + $0x78] sm:$0xff] 0.0
          %291 = vst [vmem:[%s261 + $0x80] sm:$0xff] 0.0
          %292 = vst [vmem:[%s261 + $0x88] sm:$0xff] 0.0
          %293 = vst [vmem:[%s261 + $0x90] sm:$0xff] 0.0
          %294 = vst [vmem:[%s261 + $0x98] sm:$0xff] 0.0
          %295 = vst [vmem:[%s261 + $0xa0] sm:$0xff] 0.0
          %296 = vst [vmem:[%s261 + $0xa8] sm:$0xff] 0.0
          %297 = vst [vmem:[%s261 + $0xb0] sm:$0xff] 0.0
          %298 = vst [vmem:[%s261 + $0xb8] sm:$0xff] 0.0
          %299 = vst [vmem:[%s261 + $0xc0] sm:$0xff] 0.0
          %300 = vst [vmem:[%s261 + $0xc8] sm:$0xff] 0.0
          %301 = vst [vmem:[%s261 + $0xd0] sm:$0xff] 0.0
          %302 = vst [vmem:[%s261 + $0xd8] sm:$0xff] 0.0
          %303 = vst [vmem:[%s261 + $0xe0] sm:$0xff] 0.0
          %304 = vst [vmem:[%s261 + $0xe8] sm:$0xff] 0.0
          %305 = vst [vmem:[%s261 + $0xf0] sm:$0xff] 0.0
          %306 = vst [vmem:[%s261 + $0xf8] sm:$0xff] 0.0
          %307 = vst [vmem:[%s261 + $0x100] sm:$0xff] 0.0
          %308 = vst [vmem:[%s261 + $0x108] sm:$0xff] 0.0
          %309 = vst [vmem:[%s261 + $0x110] sm:$0xff] 0.0
          %310 = vst [vmem:[%s261 + $0x118] sm:$0xff] 0.0
          %311 = vst [vmem:[%s261 + $0x120] sm:$0xff] 0.0
          %312 = vst [vmem:[%s261 + $0x128] sm:$0xff] 0.0
          %313 = vst [vmem:[%s261 + $0x130] sm:$0xff] 0.0
          %314 = vst [vmem:[%s261 + $0x138] sm:$0xff] 0.0
          %315 = vst [vmem:[%s261 + $0x140] sm:$0xff] 0.0
          %316 = vst [vmem:[%s261 + $0x148] sm:$0xff] 0.0
          %317 = vst [vmem:[%s261 + $0x150] sm:$0xff] 0.0
          %318 = vst [vmem:[%s261 + $0x158] sm:$0xff] 0.0
          %319 = vst [vmem:[%s261 + $0x160] sm:$0xff] 0.0
          %320 = vst [vmem:[%s261 + $0x168] sm:$0xff] 0.0
          %321 = vst [vmem:[%s261 + $0x170] sm:$0xff] 0.0
          %322 = vst [vmem:[%s261 + $0x178] sm:$0xff] 0.0
          %323 = vst [vmem:[%s261 + $0x180] sm:$0xff] 0.0
          %324 = vst [vmem:[%s261 + $0x188] sm:$0xff] 0.0
          %325 = vst [vmem:[%s261 + $0x190] sm:$0xff] 0.0
          %326 = vst [vmem:[%s261 + $0x198] sm:$0xff] 0.0
          %327 = vst [vmem:[%s261 + $0x1a0] sm:$0xff] 0.0
          %328 = vst [vmem:[%s261 + $0x1a8] sm:$0xff] 0.0
          %329 = vst [vmem:[%s261 + $0x1b0] sm:$0xff] 0.0
          %330 = vst [vmem:[%s261 + $0x1b8] sm:$0xff] 0.0
          %331 = vst [vmem:[%s261 + $0x1c0] sm:$0xff] 0.0
          %332 = vst [vmem:[%s261 + $0x1c8] sm:$0xff] 0.0
          %333 = vst [vmem:[%s261 + $0x1d0] sm:$0xff] 0.0
          %334 = vst [vmem:[%s261 + $0x1d8] sm:$0xff] 0.0
          %335 = vst [vmem:[%s261 + $0x1e0] sm:$0xff] 0.0
          %336 = vst [vmem:[%s261 + $0x1e8] sm:$0xff] 0.0
          %337 = vst [vmem:[%s261 + $0x1f0] sm:$0xff] 0.0
          %338 = vst [vmem:[%s261 + $0x1f8] sm:$0xff] 0.0
        $region48: #{tpu_custom_call.1} parent=35 // pred_fallthru
          _
        %v339 = vld [vmem:[%s268] sm:$0xff]
        %v340 = vld [vmem:[%s268 + $0x8] sm:$0xff]
        %v341 = vld [vmem:[%s268 + $0x10] sm:$0xff]
        %v342 = vld [vmem:[%s268 + $0x18] sm:$0xff]
        %v343 = vld [vmem:[%s268 + $0x20] sm:$0xff]
        %v344 = vld [vmem:[%s268 + $0x28] sm:$0xff]
        %v345 = vld [vmem:[%s268 + $0x30] sm:$0xff]
        %v346 = vld [vmem:[%s268 + $0x38] sm:$0xff]
        %v347 = vld [vmem:[%s268 + $0x40] sm:$0xff]
        %v348 = vld [vmem:[%s268 + $0x48] sm:$0xff]
        %v349 = vld [vmem:[%s268 + $0x50] sm:$0xff]
        %v350 = vld [vmem:[%s268 + $0x58] sm:$0xff]
        %v351 = vld [vmem:[%s268 + $0x60] sm:$0xff]
        %v352 = vld [vmem:[%s268 + $0x68] sm:$0xff]
        %v353 = vld [vmem:[%s268 + $0x70] sm:$0xff]
        %v354 = vld [vmem:[%s268 + $0x78] sm:$0xff]
        %v355 = vld [vmem:[%s268 + $0x80] sm:$0xff]
        %v356 = vld [vmem:[%s268 + $0x88] sm:$0xff]
        %v357 = vld [vmem:[%s268 + $0x90] sm:$0xff]
        %v358 = vld [vmem:[%s268 + $0x98] sm:$0xff]
        %v359 = vld [vmem:[%s268 + $0xa0] sm:$0xff]
        %v360 = vld [vmem:[%s268 + $0xa8] sm:$0xff]
        %v361 = vld [vmem:[%s268 + $0xb0] sm:$0xff]
        %v362 = vld [vmem:[%s268 + $0xb8] sm:$0xff]
        %v363 = vld [vmem:[%s268 + $0xc0] sm:$0xff]
        %v364 = vld [vmem:[%s268 + $0xc8] sm:$0xff]
        %v365 = vld [vmem:[%s268 + $0xd0] sm:$0xff]
        %v366 = vld [vmem:[%s268 + $0xd8] sm:$0xff]
        %v367 = vld [vmem:[%s268 + $0xe0] sm:$0xff]
        %v368 = vld [vmem:[%s268 + $0xe8] sm:$0xff]
        %v369 = vld [vmem:[%s268 + $0xf0] sm:$0xff]
        %v370 = vld [vmem:[%s268 + $0xf8] sm:$0xff]
        %v371 = vld [vmem:[%s268 + $0x100] sm:$0xff]
        %v372 = vld [vmem:[%s268 + $0x108] sm:$0xff]
        %v373 = vld [vmem:[%s268 + $0x110] sm:$0xff]
        %v374 = vld [vmem:[%s268 + $0x118] sm:$0xff]
        %v375 = vld [vmem:[%s268 + $0x120] sm:$0xff]
        %v376 = vld [vmem:[%s268 + $0x128] sm:$0xff]
        %v377 = vld [vmem:[%s268 + $0x130] sm:$0xff]
        %v378 = vld [vmem:[%s268 + $0x138] sm:$0xff]
        %v379 = vld [vmem:[%s268 + $0x140] sm:$0xff]
        %v380 = vld [vmem:[%s268 + $0x148] sm:$0xff]
        %v381 = vld [vmem:[%s268 + $0x150] sm:$0xff]
        %v382 = vld [vmem:[%s268 + $0x158] sm:$0xff]
        %v383 = vld [vmem:[%s268 + $0x160] sm:$0xff]
        %v384 = vld [vmem:[%s268 + $0x168] sm:$0xff]
        %v385 = vld [vmem:[%s268 + $0x170] sm:$0xff]
        %v386 = vld [vmem:[%s268 + $0x178] sm:$0xff]
        %v387 = vld [vmem:[%s268 + $0x180] sm:$0xff]
        %v388 = vld [vmem:[%s268 + $0x188] sm:$0xff]
        %v389 = vld [vmem:[%s268 + $0x190] sm:$0xff]
        %v390 = vld [vmem:[%s268 + $0x198] sm:$0xff]
        %v391 = vld [vmem:[%s268 + $0x1a0] sm:$0xff]
        %v392 = vld [vmem:[%s268 + $0x1a8] sm:$0xff]
        %v393 = vld [vmem:[%s268 + $0x1b0] sm:$0xff]
        %v394 = vld [vmem:[%s268 + $0x1b8] sm:$0xff]
        %v395 = vld [vmem:[%s268 + $0x1c0] sm:$0xff]
        %v396 = vld [vmem:[%s268 + $0x1c8] sm:$0xff]
        %v397 = vld [vmem:[%s268 + $0x1d0] sm:$0xff]
        %v398 = vld [vmem:[%s268 + $0x1d8] sm:$0xff]
        %v399 = vld [vmem:[%s268 + $0x1e0] sm:$0xff]
        %v400 = vld [vmem:[%s268 + $0x1e8] sm:$0xff]
        %v401 = vld [vmem:[%s268 + $0x1f0] sm:$0xff]
        %v402 = vld [vmem:[%s268 + $0x1f8] sm:$0xff]
        %v403 = vld [vmem:[%s2] sm:$0xff]
        %v404 = vld [vmem:[%s2 + $0x8] sm:$0xff]
        %v405 = vld [vmem:[%s2 + $0x10] sm:$0xff]
        %v406 = vld [vmem:[%s2 + $0x18] sm:$0xff]
        %v407 = vld [vmem:[%s2 + $0x20] sm:$0xff]
        %v408 = vld [vmem:[%s2 + $0x28] sm:$0xff]
        %v409 = vld [vmem:[%s2 + $0x30] sm:$0xff]
        %v410 = vld [vmem:[%s2 + $0x38] sm:$0xff]
        %v411 = vld [vmem:[%s2 + $0x40] sm:$0xff]
        %v412 = vld [vmem:[%s2 + $0x48] sm:$0xff]
        %v413 = vld [vmem:[%s2 + $0x50] sm:$0xff]
        %v414 = vld [vmem:[%s2 + $0x58] sm:$0xff]
        %v415 = vld [vmem:[%s2 + $0x60] sm:$0xff]
        %v416 = vld [vmem:[%s2 + $0x68] sm:$0xff]
        %v417 = vld [vmem:[%s2 + $0x70] sm:$0xff]
        %v418 = vld [vmem:[%s2 + $0x78] sm:$0xff]
        %v419 = vld [vmem:[#allocation5] sm:$0x1]
        %v421 = vlaneseq
        %v422 = vshrl.u32 %v421, 7
        %v423 = vsub.s32 0, %v422
        %v424 = vrot.slane %v419, %v423
        %vm426 = vcmask 261120
        %v428 = vsel %vm426, %v339, 0
        %v431 = vsel %vm426, %v340, 0
        %v434 = vsel %vm426, %v341, 0
        %v437 = vsel %vm426, %v342, 0
        %v440 = vsel %vm426, %v343, 0
        %v443 = vsel %vm426, %v344, 0
        %v446 = vsel %vm426, %v345, 0
        %v449 = vsel %vm426, %v346, 0
        %v452 = vsel %vm426, %v347, 0
        %v455 = vsel %vm426, %v348, 0
        %v458 = vsel %vm426, %v349, 0
        %v461 = vsel %vm426, %v350, 0
        %v464 = vsel %vm426, %v351, 0
        %v467 = vsel %vm426, %v352, 0
        %v470 = vsel %vm426, %v353, 0
        %v473 = vsel %vm426, %v354, 0
        %v476 = vsel %vm426, %v355, 0
        %v479 = vsel %vm426, %v356, 0
        %v482 = vsel %vm426, %v357, 0
        %v485 = vsel %vm426, %v358, 0
        %v488 = vsel %vm426, %v359, 0
        %v491 = vsel %vm426, %v360, 0
        %v494 = vsel %vm426, %v361, 0
        %v497 = vsel %vm426, %v362, 0
        %v500 = vsel %vm426, %v363, 0
        %v503 = vsel %vm426, %v364, 0
        %v506 = vsel %vm426, %v365, 0
        %v509 = vsel %vm426, %v366, 0
        %v512 = vsel %vm426, %v367, 0
        %v515 = vsel %vm426, %v368, 0
        %v518 = vsel %vm426, %v369, 0
        %v521 = vsel %vm426, %v370, 0
        %v524 = vsel %vm426, %v371, 0
        %v527 = vsel %vm426, %v372, 0
        %v530 = vsel %vm426, %v373, 0
        %v533 = vsel %vm426, %v374, 0
        %v536 = vsel %vm426, %v375, 0
        %v539 = vsel %vm426, %v376, 0
        %v542 = vsel %vm426, %v377, 0
        %v545 = vsel %vm426, %v378, 0
        %v548 = vsel %vm426, %v379, 0
        %v551 = vsel %vm426, %v380, 0
        %v554 = vsel %vm426, %v381, 0
        %v557 = vsel %vm426, %v382, 0
        %v560 = vsel %vm426, %v383, 0
        %v563 = vsel %vm426, %v384, 0
        %v566 = vsel %vm426, %v385, 0
        %v569 = vsel %vm426, %v386, 0
        %v572 = vsel %vm426, %v387, 0
        %v575 = vsel %vm426, %v388, 0
        %v578 = vsel %vm426, %v389, 0
        %v581 = vsel %vm426, %v390, 0
        %v584 = vsel %vm426, %v391, 0
        %v587 = vsel %vm426, %v392, 0
        %v590 = vsel %vm426, %v393, 0
        %v593 = vsel %vm426, %v394, 0
        %v596 = vsel %vm426, %v395, 0
        %v599 = vsel %vm426, %v396, 0
        %v602 = vsel %vm426, %v397, 0
        %v605 = vsel %vm426, %v398, 0
        %v608 = vsel %vm426, %v399, 0
        %v611 = vsel %vm426, %v400, 0
        %v614 = vsel %vm426, %v401, 0
        %v617 = vsel %vm426, %v402, 0
        %v620 = vsel %vm426, %v403, 0
        %v623 = vsel %vm426, %v404, 0
        %v626 = vsel %vm426, %v405, 0
        %v629 = vsel %vm426, %v406, 0
        %v632 = vsel %vm426, %v407, 0
        %v635 = vsel %vm426, %v408, 0
        %v638 = vsel %vm426, %v409, 0
        %v641 = vsel %vm426, %v410, 0
        %v644 = vsel %vm426, %v411, 0
        %v647 = vsel %vm426, %v412, 0
        %v650 = vsel %vm426, %v413, 0
        %v653 = vsel %vm426, %v414, 0
        %v656 = vsel %vm426, %v415, 0
        %v659 = vsel %vm426, %v416, 0
        %v662 = vsel %vm426, %v417, 0
        %v665 = vsel %vm426, %v418, 0
        %667 = vmatprep.subr.mxu0 0.0
        %668 = vmatpush1.xpose.msra.mxu0 %v620
        %669 = vmatprep.subr.mxu0 0.0
        %670 = vmatpush1.xpose.msra.mxu0 %v623
        %671 = vmatprep.subr.mxu0 0.0
        %672 = vmatpush1.xpose.msra.mxu0 %v626
        %673 = vmatprep.subr.mxu0 0.0
        %674 = vmatpush1.xpose.msra.mxu0 %v629
        %675 = vmatprep.subr.mxu0 0.0
        %676 = vmatpush1.xpose.msra.mxu0 %v632
        %677 = vmatprep.subr.mxu0 0.0
        %678 = vmatpush1.xpose.msra.mxu0 %v635
        %679 = vmatprep.subr.mxu0 0.0
        %680 = vmatpush1.xpose.msra.mxu0 %v638
        %681 = vmatprep.subr.mxu0 0.0
        %682 = vmatpush1.xpose.msra.mxu0 %v641
        %683 = vmatprep.subr.mxu0 0.0
        %684 = vmatpush1.xpose.msra.mxu0 %v644
        %685 = vmatprep.subr.mxu0 0.0
        %686 = vmatpush1.xpose.msra.mxu0 %v647
        %687 = vmatprep.subr.mxu0 0.0
        %688 = vmatpush1.xpose.msra.mxu0 %v650
        %689 = vmatprep.subr.mxu0 0.0
        %690 = vmatpush1.xpose.msra.mxu0 %v653
        %691 = vmatprep.subr.mxu0 0.0
        %692 = vmatpush1.xpose.msra.mxu0 %v656
        %693 = vmatprep.subr.mxu0 0.0
        %694 = vmatpush1.xpose.msra.mxu0 %v659
        %695 = vmatprep.subr.mxu0 0.0
        %696 = vmatpush1.xpose.msra.mxu0 %v662
        %697 = vmatprep.subr.mxu0 0.0
        %698 = vmatpush1.xpose.msra.mxu0 %v665
        %699 = vmatprep.subr.mxu0 0.0
        %700 = vmatpush1.xpose.msra.mxu0 0.0
        %701 = vmatprep.subr.mxu0 0.0
        %702 = vmatpush1.xpose.msra.mxu0 0.0
        %703 = vmatprep.subr.mxu0 0.0
        %704 = vmatpush1.xpose.msra.mxu0 0.0
        %705 = vmatprep.subr.mxu0 0.0
        %706 = vmatpush1.xpose.msra.mxu0 0.0
        %707 = vmatprep.subr.mxu0 0.0
        %708 = vmatpush1.xpose.msra.mxu0 0.0
        %709 = vmatprep.subr.mxu0 0.0
        %710 = vmatpush1.xpose.msra.mxu0 0.0
        %711 = vmatprep.subr.mxu0 0.0
        %712 = vmatpush1.xpose.msra.mxu0 0.0
        %713 = vmatprep.subr.mxu0 0.0
        %714 = vmatpush1.xpose.msra.mxu0 0.0
        %715 = vmatprep.subr.mxu0 0.0
        %716 = vmatpush1.xpose.msra.mxu0 0.0
        %717 = vmatprep.subr.mxu0 0.0
        %718 = vmatpush1.xpose.msra.mxu0 0.0
        %719 = vmatprep.subr.mxu0 0.0
        %720 = vmatpush1.xpose.msra.mxu0 0.0
        %721 = vmatprep.subr.mxu0 0.0
        %722 = vmatpush1.xpose.msra.mxu0 0.0
        %723 = vmatprep.subr.mxu0 0.0
        %724 = vmatpush1.xpose.msra.mxu0 0.0
        %725 = vmatprep.subr.mxu0 0.0
        %726 = vmatpush1.xpose.msra.mxu0 0.0
        %727 = vmatprep.subr.mxu0 0.0
        %728 = vmatpush1.xpose.msra.mxu0 0.0
        %729 = vmatprep.subr.mxu0 0.0
        %730 = vmatpush1.xpose.msra.mxu0 0.0
        %731 = vmatprep.mubr.f32.mxu0 0.0
        %732 = vmatmul.mubr.f32.gmra.mrb[0].mxu0 %v428
        %v733 = vpop.f32.mrb[0].mxu0
        %v734 = vadd.f32 %v424, %v733
        %v735 = vpop.f32.mrb[0].mxu0
        %736 = vmatprep.mubr.f32.mxu0 0.0
        %737 = vmatmul.mubr.f32.gmra.mrb[0].mxu0 %v431
        %v738 = vpop.f32.mrb[0].mxu0
        %v739 = vadd.f32 %v424, %v738
        %v740 = vpop.f32.mrb[0].mxu0
        %741 = vmatprep.mubr.f32.mxu0 0.0
        %742 = vmatmul.mubr.f32.gmra.mrb[0].mxu0 %v434
        %v743 = vpop.f32.mrb[0].mxu0
        %v744 = vadd.f32 %v424, %v743
        %v745 = vpop.f32.mrb[0].mxu0
        %746 = vmatprep.mubr.f32.mxu0 0.0
        %747 = vmatmul.mubr.f32.gmra.mrb[0].mxu0 %v437
        %v748 = vpop.f32.mrb[0].mxu0
        %v749 = vadd.f32 %v424, %v748
        %v750 = vpop.f32.mrb[0].mxu0
        %751 = vmatprep.mubr.f32.mxu0 0.0
        %752 = vmatmul.mubr.f32.gmra.mrb[0].mxu0 %v440
        %v753 = vpop.f32.mrb[0].mxu0
        %v754 = vadd.f32 %v424, %v753
        %v755 = vpop.f32.mrb[0].mxu0
        %756 = vmatprep.mubr.f32.mxu0 0.0
        %757 = vmatmul.mubr.f32.gmra.mrb[0].mxu0 %v443
        %v758 = vpop.f32.mrb[0].mxu0
        %v759 = vadd.f32 %v424, %v758
        %v760 = vpop.f32.mrb[0].mxu0
        %761 = vmatprep.mubr.f32.mxu0 0.0
        %762 = vmatmul.mubr.f32.gmra.mrb[0].mxu0 %v446
        %v763 = vpop.f32.mrb[0].mxu0
        %v764 = vadd.f32 %v424, %v763
        %v765 = vpop.f32.mrb[0].mxu0
        %766 = vmatprep.mubr.f32.mxu0 0.0
        %767 = vmatmul.mubr.f32.gmra.mrb[0].mxu0 %v449
        %v768 = vpop.f32.mrb[0].mxu0
        %v769 = vadd.f32 %v424, %v768
        %v770 = vpop.f32.mrb[0].mxu0
        %771 = vmatprep.mubr.f32.mxu0 0.0
        %772 = vmatmul.mubr.f32.gmra.mrb[0].mxu0 %v452
        %v773 = vpop.f32.mrb[0].mxu0
        %v774 = vadd.f32 %v424, %v773
        %v775 = vpop.f32.mrb[0].mxu0
        %776 = vmatprep.mubr.f32.mxu0 0.0
        %777 = vmatmul.mubr.f32.gmra.mrb[0].mxu0 %v455
        %v778 = vpop.f32.mrb[0].mxu0
        %v779 = vadd.f32 %v424, %v778
        %v780 = vpop.f32.mrb[0].mxu0
        %781 = vmatprep.mubr.f32.mxu0 0.0
        %782 = vmatmul.mubr.f32.gmra.mrb[0].mxu0 %v458
        %v783 = vpop.f32.mrb[0].mxu0
        %v784 = vadd.f32 %v424, %v783
        %v785 = vpop.f32.mrb[0].mxu0
        %786 = vmatprep.mubr.f32.mxu0 0.0
        %787 = vmatmul.mubr.f32.gmra.mrb[0].mxu0 %v461
        %v788 = vpop.f32.mrb[0].mxu0
        %v789 = vadd.f32 %v424, %v788
        %v790 = vpop.f32.mrb[0].mxu0
        %791 = vmatprep.mubr.f32.mxu0 0.0
        %792 = vmatmul.mubr.f32.gmra.mrb[0].mxu0 %v464
        %v793 = vpop.f32.mrb[0].mxu0
        %v794 = vadd.f32 %v424, %v793
        %v795 = vpop.f32.mrb[0].mxu0
        %796 = vmatprep.mubr.f32.mxu0 0.0
        %797 = vmatmul.mubr.f32.gmra.mrb[0].mxu0 %v467
        %v798 = vpop.f32.mrb[0].mxu0
        %v799 = vadd.f32 %v424, %v798
        %v800 = vpop.f32.mrb[0].mxu0
        %801 = vmatprep.mubr.f32.mxu0 0.0
        %802 = vmatmul.mubr.f32.gmra.mrb[0].mxu0 %v470
        %v803 = vpop.f32.mrb[0].mxu0
        %v804 = vadd.f32 %v424, %v803
        %v805 = vpop.f32.mrb[0].mxu0
        %806 = vmatprep.mubr.f32.mxu0 0.0
        %807 = vmatmul.mubr.f32.gmra.mrb[0].mxu0 %v473
        %v808 = vpop.f32.mrb[0].mxu0
        %v809 = vadd.f32 %v424, %v808
        %v810 = vpop.f32.mrb[0].mxu0
        %811 = vmatprep.mubr.f32.mxu0 0.0
        %812 = vmatmul.mubr.f32.gmra.mrb[0].mxu0 %v476
        %v813 = vpop.f32.mrb[0].mxu0
        %v814 = vadd.f32 %v424, %v813
        %v815 = vpop.f32.mrb[0].mxu0
        %816 = vmatprep.mubr.f32.mxu0 0.0
        %817 = vmatmul.mubr.f32.gmra.mrb[0].mxu0 %v479
        %v818 = vpop.f32.mrb[0].mxu0
        %v819 = vadd.f32 %v424, %v818
        %v820 = vpop.f32.mrb[0].mxu0
        %821 = vmatprep.mubr.f32.mxu0 0.0
        %822 = vmatmul.mubr.f32.gmra.mrb[0].mxu0 %v482
        %v823 = vpop.f32.mrb[0].mxu0
        %v824 = vadd.f32 %v424, %v823
        %v825 = vpop.f32.mrb[0].mxu0
        %826 = vmatprep.mubr.f32.mxu0 0.0
        %827 = vmatmul.mubr.f32.gmra.mrb[0].mxu0 %v485
        %v828 = vpop.f32.mrb[0].mxu0
        %v829 = vadd.f32 %v424, %v828
        %v830 = vpop.f32.mrb[0].mxu0
        %831 = vmatprep.mubr.f32.mxu0 0.0
        %832 = vmatmul.mubr.f32.gmra.mrb[0].mxu0 %v488
        %v833 = vpop.f32.mrb[0].mxu0
        %v834 = vadd.f32 %v424, %v833
        %v835 = vpop.f32.mrb[0].mxu0
        %836 = vmatprep.mubr.f32.mxu0 0.0
        %837 = vmatmul.mubr.f32.gmra.mrb[0].mxu0 %v491
        %v838 = vpop.f32.mrb[0].mxu0
        %v839 = vadd.f32 %v424, %v838
        %v840 = vpop.f32.mrb[0].mxu0
        %841 = vmatprep.mubr.f32.mxu0 0.0
        %842 = vmatmul.mubr.f32.gmra.mrb[0].mxu0 %v494
        %v843 = vpop.f32.mrb[0].mxu0
        %v844 = vadd.f32 %v424, %v843
        %v845 = vpop.f32.mrb[0].mxu0
        %846 = vmatprep.mubr.f32.mxu0 0.0
        %847 = vmatmul.mubr.f32.gmra.mrb[0].mxu0 %v497
        %v848 = vpop.f32.mrb[0].mxu0
        %v849 = vadd.f32 %v424, %v848
        %v850 = vpop.f32.mrb[0].mxu0
        %851 = vmatprep.mubr.f32.mxu0 0.0
        %852 = vmatmul.mubr.f32.gmra.mrb[0].mxu0 %v500
        %v853 = vpop.f32.mrb[0].mxu0
        %v854 = vadd.f32 %v424, %v853
        %v855 = vpop.f32.mrb[0].mxu0
        %856 = vmatprep.mubr.f32.mxu0 0.0
        %857 = vmatmul.mubr.f32.gmra.mrb[0].mxu0 %v503
        %v858 = vpop.f32.mrb[0].mxu0
        %v859 = vadd.f32 %v424, %v858
        %v860 = vpop.f32.mrb[0].mxu0
        %861 = vmatprep.mubr.f32.mxu0 0.0
        %862 = vmatmul.mubr.f32.gmra.mrb[0].mxu0 %v506
        %v863 = vpop.f32.mrb[0].mxu0
        %v864 = vadd.f32 %v424, %v863
        %v865 = vpop.f32.mrb[0].mxu0
        %866 = vmatprep.mubr.f32.mxu0 0.0
        %867 = vmatmul.mubr.f32.gmra.mrb[0].mxu0 %v509
        %v868 = vpop.f32.mrb[0].mxu0
        %v869 = vadd.f32 %v424, %v868
        %v870 = vpop.f32.mrb[0].mxu0
        %871 = vmatprep.mubr.f32.mxu0 0.0
        %872 = vmatmul.mubr.f32.gmra.mrb[0].mxu0 %v512
        %v873 = vpop.f32.mrb[0].mxu0
        %v874 = vadd.f32 %v424, %v873
        %v875 = vpop.f32.mrb[0].mxu0
        %876 = vmatprep.mubr.f32.mxu0 0.0
        %877 = vmatmul.mubr.f32.gmra.mrb[0].mxu0 %v515
        %v878 = vpop.f32.mrb[0].mxu0
        %v879 = vadd.f32 %v424, %v878
        %v880 = vpop.f32.mrb[0].mxu0
        %881 = vmatprep.mubr.f32.mxu0 0.0
        %882 = vmatmul.mubr.f32.gmra.mrb[0].mxu0 %v518
        %v883 = vpop.f32.mrb[0].mxu0
        %v884 = vadd.f32 %v424, %v883
        %v885 = vpop.f32.mrb[0].mxu0
        %886 = vmatprep.mubr.f32.mxu0 0.0
        %887 = vmatmul.mubr.f32.gmra.mrb[0].mxu0 %v521
        %v888 = vpop.f32.mrb[0].mxu0
        %v889 = vadd.f32 %v424, %v888
        %v890 = vpop.f32.mrb[0].mxu0
        %891 = vmatprep.mubr.f32.mxu0 0.0
        %892 = vmatmul.mubr.f32.gmra.mrb[0].mxu0 %v524
        %v893 = vpop.f32.mrb[0].mxu0
        %v894 = vadd.f32 %v424, %v893
        %v895 = vpop.f32.mrb[0].mxu0
        %896 = vmatprep.mubr.f32.mxu0 0.0
        %897 = vmatmul.mubr.f32.gmra.mrb[0].mxu0 %v527
        %v898 = vpop.f32.mrb[0].mxu0
        %v899 = vadd.f32 %v424, %v898
        %v900 = vpop.f32.mrb[0].mxu0
        %901 = vmatprep.mubr.f32.mxu0 0.0
        %902 = vmatmul.mubr.f32.gmra.mrb[0].mxu0 %v530
        %v903 = vpop.f32.mrb[0].mxu0
        %v904 = vadd.f32 %v424, %v903
        %v905 = vpop.f32.mrb[0].mxu0
        %906 = vmatprep.mubr.f32.mxu0 0.0
        %907 = vmatmul.mubr.f32.gmra.mrb[0].mxu0 %v533
        %v908 = vpop.f32.mrb[0].mxu0
        %v909 = vadd.f32 %v424, %v908
        %v910 = vpop.f32.mrb[0].mxu0
        %911 = vmatprep.mubr.f32.mxu0 0.0
        %912 = vmatmul.mubr.f32.gmra.mrb[0].mxu0 %v536
        %v913 = vpop.f32.mrb[0].mxu0
        %v914 = vadd.f32 %v424, %v913
        %v915 = vpop.f32.mrb[0].mxu0
        %916 = vmatprep.mubr.f32.mxu0 0.0
        %917 = vmatmul.mubr.f32.gmra.mrb[0].mxu0 %v539
        %v918 = vpop.f32.mrb[0].mxu0
        %v919 = vadd.f32 %v424, %v918
        %v920 = vpop.f32.mrb[0].mxu0
        %921 = vmatprep.mubr.f32.mxu0 0.0
        %922 = vmatmul.mubr.f32.gmra.mrb[0].mxu0 %v542
        %v923 = vpop.f32.mrb[0].mxu0
        %v924 = vadd.f32 %v424, %v923
        %v925 = vpop.f32.mrb[0].mxu0
        %926 = vmatprep.mubr.f32.mxu0 0.0
        %927 = vmatmul.mubr.f32.gmra.mrb[0].mxu0 %v545
        %v928 = vpop.f32.mrb[0].mxu0
        %v929 = vadd.f32 %v424, %v928
        %v930 = vpop.f32.mrb[0].mxu0
        %931 = vmatprep.mubr.f32.mxu0 0.0
        %932 = vmatmul.mubr.f32.gmra.mrb[0].mxu0 %v548
        %v933 = vpop.f32.mrb[0].mxu0
        %v934 = vadd.f32 %v424, %v933
        %v935 = vpop.f32.mrb[0].mxu0
        %936 = vmatprep.mubr.f32.mxu0 0.0
        %937 = vmatmul.mubr.f32.gmra.mrb[0].mxu0 %v551
        %v938 = vpop.f32.mrb[0].mxu0
        %v939 = vadd.f32 %v424, %v938
        %v940 = vpop.f32.mrb[0].mxu0
        %941 = vmatprep.mubr.f32.mxu0 0.0
        %942 = vmatmul.mubr.f32.gmra.mrb[0].mxu0 %v554
        %v943 = vpop.f32.mrb[0].mxu0
        %v944 = vadd.f32 %v424, %v943
        %v945 = vpop.f32.mrb[0].mxu0
        %946 = vmatprep.mubr.f32.mxu0 0.0
        %947 = vmatmul.mubr.f32.gmra.mrb[0].mxu0 %v557
        %v948 = vpop.f32.mrb[0].mxu0
        %v949 = vadd.f32 %v424, %v948
        %v950 = vpop.f32.mrb[0].mxu0
        %951 = vmatprep.mubr.f32.mxu0 0.0
        %952 = vmatmul.mubr.f32.gmra.mrb[0].mxu0 %v560
        %v953 = vpop.f32.mrb[0].mxu0
        %v954 = vadd.f32 %v424, %v953
        %v955 = vpop.f32.mrb[0].mxu0
        %956 = vmatprep.mubr.f32.mxu0 0.0
        %957 = vmatmul.mubr.f32.gmra.mrb[0].mxu0 %v563
        %v958 = vpop.f32.mrb[0].mxu0
        %v959 = vadd.f32 %v424, %v958
        %v960 = vpop.f32.mrb[0].mxu0
        %961 = vmatprep.mubr.f32.mxu0 0.0
        %962 = vmatmul.mubr.f32.gmra.mrb[0].mxu0 %v566
        %v963 = vpop.f32.mrb[0].mxu0
        %v964 = vadd.f32 %v424, %v963
        %v965 = vpop.f32.mrb[0].mxu0
        %966 = vmatprep.mubr.f32.mxu0 0.0
        %967 = vmatmul.mubr.f32.gmra.mrb[0].mxu0 %v569
        %v968 = vpop.f32.mrb[0].mxu0
        %v969 = vadd.f32 %v424, %v968
        %v970 = vpop.f32.mrb[0].mxu0
        %971 = vmatprep.mubr.f32.mxu0 0.0
        %972 = vmatmul.mubr.f32.gmra.mrb[0].mxu0 %v572
        %v973 = vpop.f32.mrb[0].mxu0
        %v974 = vadd.f32 %v424, %v973
        %v975 = vpop.f32.mrb[0].mxu0
        %976 = vmatprep.mubr.f32.mxu0 0.0
        %977 = vmatmul.mubr.f32.gmra.mrb[0].mxu0 %v575
        %v978 = vpop.f32.mrb[0].mxu0
        %v979 = vadd.f32 %v424, %v978
        %v980 = vpop.f32.mrb[0].mxu0
        %981 = vmatprep.mubr.f32.mxu0 0.0
        %982 = vmatmul.mubr.f32.gmra.mrb[0].mxu0 %v578
        %v983 = vpop.f32.mrb[0].mxu0
        %v984 = vadd.f32 %v424, %v983
        %v985 = vpop.f32.mrb[0].mxu0
        %986 = vmatprep.mubr.f32.mxu0 0.0
        %987 = vmatmul.mubr.f32.gmra.mrb[0].mxu0 %v581
        %v988 = vpop.f32.mrb[0].mxu0
        %v989 = vadd.f32 %v424, %v988
        %v990 = vpop.f32.mrb[0].mxu0
        %991 = vmatprep.mubr.f32.mxu0 0.0
        %992 = vmatmul.mubr.f32.gmra.mrb[0].mxu0 %v584
        %v993 = vpop.f32.mrb[0].mxu0
        %v994 = vadd.f32 %v424, %v993
        %v995 = vpop.f32.mrb[0].mxu0
        %996 = vmatprep.mubr.f32.mxu0 0.0
        %997 = vmatmul.mubr.f32.gmra.mrb[0].mxu0 %v587
        %v998 = vpop.f32.mrb[0].mxu0
        %v999 = vadd.f32 %v424, %v998
        %v1000 = vpop.f32.mrb[0].mxu0
        %1001 = vmatprep.mubr.f32.mxu0 0.0
        %1002 = vmatmul.mubr.f32.gmra.mrb[0].mxu0 %v590
        %v1003 = vpop.f32.mrb[0].mxu0
        %v1004 = vadd.f32 %v424, %v1003
        %v1005 = vpop.f32.mrb[0].mxu0
        %1006 = vmatprep.mubr.f32.mxu0 0.0
        %1007 = vmatmul.mubr.f32.gmra.mrb[0].mxu0 %v593
        %v1008 = vpop.f32.mrb[0].mxu0
        %v1009 = vadd.f32 %v424, %v1008
        %v1010 = vpop.f32.mrb[0].mxu0
        %1011 = vmatprep.mubr.f32.mxu0 0.0
        %1012 = vmatmul.mubr.f32.gmra.mrb[0].mxu0 %v596
        %v1013 = vpop.f32.mrb[0].mxu0
        %v1014 = vadd.f32 %v424, %v1013
        %v1015 = vpop.f32.mrb[0].mxu0
        %1016 = vmatprep.mubr.f32.mxu0 0.0
        %1017 = vmatmul.mubr.f32.gmra.mrb[0].mxu0 %v599
        %v1018 = vpop.f32.mrb[0].mxu0
        %v1019 = vadd.f32 %v424, %v1018
        %v1020 = vpop.f32.mrb[0].mxu0
        %1021 = vmatprep.mubr.f32.mxu0 0.0
        %1022 = vmatmul.mubr.f32.gmra.mrb[0].mxu0 %v602
        %v1023 = vpop.f32.mrb[0].mxu0
        %v1024 = vadd.f32 %v424, %v1023
        %v1025 = vpop.f32.mrb[0].mxu0
        %1026 = vmatprep.mubr.f32.mxu0 0.0
        %1027 = vmatmul.mubr.f32.gmra.mrb[0].mxu0 %v605
        %v1028 = vpop.f32.mrb[0].mxu0
        %v1029 = vadd.f32 %v424, %v1028
        %v1030 = vpop.f32.mrb[0].mxu0
        %1031 = vmatprep.mubr.f32.mxu0 0.0
        %1032 = vmatmul.mubr.f32.gmra.mrb[0].mxu0 %v608
        %v1033 = vpop.f32.mrb[0].mxu0
        %v1034 = vadd.f32 %v424, %v1033
        %v1035 = vpop.f32.mrb[0].mxu0
        %1036 = vmatprep.mubr.f32.mxu0 0.0
        %1037 = vmatmul.mubr.f32.gmra.mrb[0].mxu0 %v611
        %v1038 = vpop.f32.mrb[0].mxu0
        %v1039 = vadd.f32 %v424, %v1038
        %v1040 = vpop.f32.mrb[0].mxu0
        %1041 = vmatprep.mubr.f32.mxu0 0.0
        %1042 = vmatmul.mubr.f32.gmra.mrb[0].mxu0 %v614
        %v1043 = vpop.f32.mrb[0].mxu0
        %v1044 = vadd.f32 %v424, %v1043
        %v1045 = vpop.f32.mrb[0].mxu0
        %1046 = vmatprep.mubr.f32.mxu0 0.0
        %1047 = vmatmul.mubr.f32.gmra.mrb[0].mxu0 %v617
        %v1048 = vpop.f32.mrb[0].mxu0
        %v1049 = vadd.f32 %v424, %v1048
        %v1050 = vpop.f32.mrb[0].mxu0
        %1051 = vdwg.mxu0
        %v1052 = vld [vmem:[%s261] sm:$0xff]
        %v1053 = vld [vmem:[%s261 + $0x8] sm:$0xff]
        %v1054 = vld [vmem:[%s261 + $0x10] sm:$0xff]
        %v1055 = vld [vmem:[%s261 + $0x18] sm:$0xff]
        %v1056 = vld [vmem:[%s261 + $0x20] sm:$0xff]
        %v1057 = vld [vmem:[%s261 + $0x28] sm:$0xff]
        %v1058 = vld [vmem:[%s261 + $0x30] sm:$0xff]
        %v1059 = vld [vmem:[%s261 + $0x38] sm:$0xff]
        %v1060 = vld [vmem:[%s261 + $0x40] sm:$0xff]
        %v1061 = vld [vmem:[%s261 + $0x48] sm:$0xff]
        %v1062 = vld [vmem:[%s261 + $0x50] sm:$0xff]
        %v1063 = vld [vmem:[%s261 + $0x58] sm:$0xff]
        %v1064 = vld [vmem:[%s261 + $0x60] sm:$0xff]
        %v1065 = vld [vmem:[%s261 + $0x68] sm:$0xff]
        %v1066 = vld [vmem:[%s261 + $0x70] sm:$0xff]
        %v1067 = vld [vmem:[%s261 + $0x78] sm:$0xff]
        %v1068 = vld [vmem:[%s261 + $0x80] sm:$0xff]
        %v1069 = vld [vmem:[%s261 + $0x88] sm:$0xff]
        %v1070 = vld [vmem:[%s261 + $0x90] sm:$0xff]
        %v1071 = vld [vmem:[%s261 + $0x98] sm:$0xff]
        %v1072 = vld [vmem:[%s261 + $0xa0] sm:$0xff]
        %v1073 = vld [vmem:[%s261 + $0xa8] sm:$0xff]
        %v1074 = vld [vmem:[%s261 + $0xb0] sm:$0xff]
        %v1075 = vld [vmem:[%s261 + $0xb8] sm:$0xff]
        %v1076 = vld [vmem:[%s261 + $0xc0] sm:$0xff]
        %v1077 = vld [vmem:[%s261 + $0xc8] sm:$0xff]
        %v1078 = vld [vmem:[%s261 + $0xd0] sm:$0xff]
        %v1079 = vld [vmem:[%s261 + $0xd8] sm:$0xff]
        %v1080 = vld [vmem:[%s261 + $0xe0] sm:$0xff]
        %v1081 = vld [vmem:[%s261 + $0xe8] sm:$0xff]
        %v1082 = vld [vmem:[%s261 + $0xf0] sm:$0xff]
        %v1083 = vld [vmem:[%s261 + $0xf8] sm:$0xff]
        %v1084 = vld [vmem:[%s261 + $0x100] sm:$0xff]
        %v1085 = vld [vmem:[%s261 + $0x108] sm:$0xff]
        %v1086 = vld [vmem:[%s261 + $0x110] sm:$0xff]
        %v1087 = vld [vmem:[%s261 + $0x118] sm:$0xff]
        %v1088 = vld [vmem:[%s261 + $0x120] sm:$0xff]
        %v1089 = vld [vmem:[%s261 + $0x128] sm:$0xff]
        %v1090 = vld [vmem:[%s261 + $0x130] sm:$0xff]
        %v1091 = vld [vmem:[%s261 + $0x138] sm:$0xff]
        %v1092 = vld [vmem:[%s261 + $0x140] sm:$0xff]
        %v1093 = vld [vmem:[%s261 + $0x148] sm:$0xff]
        %v1094 = vld [vmem:[%s261 + $0x150] sm:$0xff]
        %v1095 = vld [vmem:[%s261 + $0x158] sm:$0xff]
        %v1096 = vld [vmem:[%s261 + $0x160] sm:$0xff]
        %v1097 = vld [vmem:[%s261 + $0x168] sm:$0xff]
        %v1098 = vld [vmem:[%s261 + $0x170] sm:$0xff]
        %v1099 = vld [vmem:[%s261 + $0x178] sm:$0xff]
        %v1100 = vld [vmem:[%s261 + $0x180] sm:$0xff]
        %v1101 = vld [vmem:[%s261 + $0x188] sm:$0xff]
        %v1102 = vld [vmem:[%s261 + $0x190] sm:$0xff]
        %v1103 = vld [vmem:[%s261 + $0x198] sm:$0xff]
        %v1104 = vld [vmem:[%s261 + $0x1a0] sm:$0xff]
        %v1105 = vld [vmem:[%s261 + $0x1a8] sm:$0xff]
        %v1106 = vld [vmem:[%s261 + $0x1b0] sm:$0xff]
        %v1107 = vld [vmem:[%s261 + $0x1b8] sm:$0xff]
        %v1108 = vld [vmem:[%s261 + $0x1c0] sm:$0xff]
        %v1109 = vld [vmem:[%s261 + $0x1c8] sm:$0xff]
        %v1110 = vld [vmem:[%s261 + $0x1d0] sm:$0xff]
        %v1111 = vld [vmem:[%s261 + $0x1d8] sm:$0xff]
        %v1112 = vld [vmem:[%s261 + $0x1e0] sm:$0xff]
        %v1113 = vld [vmem:[%s261 + $0x1e8] sm:$0xff]
        %v1114 = vld [vmem:[%s261 + $0x1f0] sm:$0xff]
        %v1115 = vld [vmem:[%s261 + $0x1f8] sm:$0xff]
        %v1116 = vld [vmem:[%s228] sm:$0xff]
        %v1117 = vld [vmem:[%s228 + $0x8] sm:$0xff]
        %v1118 = vld [vmem:[%s228 + $0x10] sm:$0xff]
        %v1119 = vld [vmem:[%s228 + $0x18] sm:$0xff]
        %v1120 = vld [vmem:[%s228 + $0x20] sm:$0xff]
        %v1121 = vld [vmem:[%s228 + $0x28] sm:$0xff]
        %v1122 = vld [vmem:[%s228 + $0x30] sm:$0xff]
        %v1123 = vld [vmem:[%s228 + $0x38] sm:$0xff]
        %v1124 = vld [vmem:[%s228 + $0x40] sm:$0xff]
        %v1125 = vld [vmem:[%s228 + $0x48] sm:$0xff]
        %v1126 = vld [vmem:[%s228 + $0x50] sm:$0xff]
        %v1127 = vld [vmem:[%s228 + $0x58] sm:$0xff]
        %v1128 = vld [vmem:[%s228 + $0x60] sm:$0xff]
        %v1129 = vld [vmem:[%s228 + $0x68] sm:$0xff]
        %v1130 = vld [vmem:[%s228 + $0x70] sm:$0xff]
        %v1131 = vld [vmem:[%s228 + $0x78] sm:$0xff]
        %v1132 = vld [vmem:[%s228 + $0x80] sm:$0xff]
        %v1133 = vld [vmem:[%s228 + $0x88] sm:$0xff]
        %v1134 = vld [vmem:[%s228 + $0x90] sm:$0xff]
        %v1135 = vld [vmem:[%s228 + $0x98] sm:$0xff]
        %v1136 = vld [vmem:[%s228 + $0xa0] sm:$0xff]
        %v1137 = vld [vmem:[%s228 + $0xa8] sm:$0xff]
        %v1138 = vld [vmem:[%s228 + $0xb0] sm:$0xff]
        %v1139 = vld [vmem:[%s228 + $0xb8] sm:$0xff]
        %v1140 = vld [vmem:[%s228 + $0xc0] sm:$0xff]
        %v1141 = vld [vmem:[%s228 + $0xc8] sm:$0xff]
        %v1142 = vld [vmem:[%s228 + $0xd0] sm:$0xff]
        %v1143 = vld [vmem:[%s228 + $0xd8] sm:$0xff]
        %v1144 = vld [vmem:[%s228 + $0xe0] sm:$0xff]
        %v1145 = vld [vmem:[%s228 + $0xe8] sm:$0xff]
        %v1146 = vld [vmem:[%s228 + $0xf0] sm:$0xff]
        %v1147 = vld [vmem:[%s228 + $0xf8] sm:$0xff]
        %v1148 = vld [vmem:[%s228 + $0x100] sm:$0xff]
        %v1149 = vld [vmem:[%s228 + $0x108] sm:$0xff]
        %v1150 = vld [vmem:[%s228 + $0x110] sm:$0xff]
        %v1151 = vld [vmem:[%s228 + $0x118] sm:$0xff]
        %v1152 = vld [vmem:[%s228 + $0x120] sm:$0xff]
        %v1153 = vld [vmem:[%s228 + $0x128] sm:$0xff]
        %v1154 = vld [vmem:[%s228 + $0x130] sm:$0xff]
        %v1155 = vld [vmem:[%s228 + $0x138] sm:$0xff]
        %v1156 = vld [vmem:[%s228 + $0x140] sm:$0xff]
        %v1157 = vld [vmem:[%s228 + $0x148] sm:$0xff]
        %v1158 = vld [vmem:[%s228 + $0x150] sm:$0xff]
        %v1159 = vld [vmem:[%s228 + $0x158] sm:$0xff]
        %v1160 = vld [vmem:[%s228 + $0x160] sm:$0xff]
        %v1161 = vld [vmem:[%s228 + $0x168] sm:$0xff]
        %v1162 = vld [vmem:[%s228 + $0x170] sm:$0xff]
        %v1163 = vld [vmem:[%s228 + $0x178] sm:$0xff]
        %v1164 = vld [vmem:[%s228 + $0x180] sm:$0xff]
        %v1165 = vld [vmem:[%s228 + $0x188] sm:$0xff]
        %v1166 = vld [vmem:[%s228 + $0x190] sm:$0xff]
        %v1167 = vld [vmem:[%s228 + $0x198] sm:$0xff]
        %v1168 = vld [vmem:[%s228 + $0x1a0] sm:$0xff]
        %v1169 = vld [vmem:[%s228 + $0x1a8] sm:$0xff]
        %v1170 = vld [vmem:[%s228 + $0x1b0] sm:$0xff]
        %v1171 = vld [vmem:[%s228 + $0x1b8] sm:$0xff]
        %v1172 = vld [vmem:[%s228 + $0x1c0] sm:$0xff]
        %v1173 = vld [vmem:[%s228 + $0x1c8] sm:$0xff]
        %v1174 = vld [vmem:[%s228 + $0x1d0] sm:$0xff]
        %v1175 = vld [vmem:[%s228 + $0x1d8] sm:$0xff]
        %v1176 = vld [vmem:[%s228 + $0x1e0] sm:$0xff]
        %v1177 = vld [vmem:[%s228 + $0x1e8] sm:$0xff]
        %v1178 = vld [vmem:[%s228 + $0x1f0] sm:$0xff]
        %v1179 = vld [vmem:[%s228 + $0x1f8] sm:$0xff]
        %v1180 = vld [vmem:[%s228 + $0x200] sm:$0xff]
        %v1181 = vld [vmem:[%s228 + $0x208] sm:$0xff]
        %v1182 = vld [vmem:[%s228 + $0x210] sm:$0xff]
        %v1183 = vld [vmem:[%s228 + $0x218] sm:$0xff]
        %v1184 = vld [vmem:[%s228 + $0x220] sm:$0xff]
        %v1185 = vld [vmem:[%s228 + $0x228] sm:$0xff]
        %v1186 = vld [vmem:[%s228 + $0x230] sm:$0xff]
        %v1187 = vld [vmem:[%s228 + $0x238] sm:$0xff]
        %v1188 = vld [vmem:[%s228 + $0x240] sm:$0xff]
        %v1189 = vld [vmem:[%s228 + $0x248] sm:$0xff]
        %v1190 = vld [vmem:[%s228 + $0x250] sm:$0xff]
        %v1191 = vld [vmem:[%s228 + $0x258] sm:$0xff]
        %v1192 = vld [vmem:[%s228 + $0x260] sm:$0xff]
        %v1193 = vld [vmem:[%s228 + $0x268] sm:$0xff]
        %v1194 = vld [vmem:[%s228 + $0x270] sm:$0xff]
        %v1195 = vld [vmem:[%s228 + $0x278] sm:$0xff]
        %v1196 = vld [vmem:[%s228 + $0x280] sm:$0xff]
        %v1197 = vld [vmem:[%s228 + $0x288] sm:$0xff]
        %v1198 = vld [vmem:[%s228 + $0x290] sm:$0xff]
        %v1199 = vld [vmem:[%s228 + $0x298] sm:$0xff]
        %v1200 = vld [vmem:[%s228 + $0x2a0] sm:$0xff]
        %v1201 = vld [vmem:[%s228 + $0x2a8] sm:$0xff]
        %v1202 = vld [vmem:[%s228 + $0x2b0] sm:$0xff]
        %v1203 = vld [vmem:[%s228 + $0x2b8] sm:$0xff]
        %v1204 = vld [vmem:[%s228 + $0x2c0] sm:$0xff]
        %v1205 = vld [vmem:[%s228 + $0x2c8] sm:$0xff]
        %v1206 = vld [vmem:[%s228 + $0x2d0] sm:$0xff]
        %v1207 = vld [vmem:[%s228 + $0x2d8] sm:$0xff]
        %v1208 = vld [vmem:[%s228 + $0x2e0] sm:$0xff]
        %v1209 = vld [vmem:[%s228 + $0x2e8] sm:$0xff]
        %v1210 = vld [vmem:[%s228 + $0x2f0] sm:$0xff]
        %v1211 = vld [vmem:[%s228 + $0x2f8] sm:$0xff]
        %v1212 = vld [vmem:[%s228 + $0x300] sm:$0xff]
        %v1213 = vld [vmem:[%s228 + $0x308] sm:$0xff]
        %v1214 = vld [vmem:[%s228 + $0x310] sm:$0xff]
        %v1215 = vld [vmem:[%s228 + $0x318] sm:$0xff]
        %v1216 = vld [vmem:[%s228 + $0x320] sm:$0xff]
        %v1217 = vld [vmem:[%s228 + $0x328] sm:$0xff]
        %v1218 = vld [vmem:[%s228 + $0x330] sm:$0xff]
        %v1219 = vld [vmem:[%s228 + $0x338] sm:$0xff]
        %v1220 = vld [vmem:[%s228 + $0x340] sm:$0xff]
        %v1221 = vld [vmem:[%s228 + $0x348] sm:$0xff]
        %v1222 = vld [vmem:[%s228 + $0x350] sm:$0xff]
        %v1223 = vld [vmem:[%s228 + $0x358] sm:$0xff]
        %v1224 = vld [vmem:[%s228 + $0x360] sm:$0xff]
        %v1225 = vld [vmem:[%s228 + $0x368] sm:$0xff]
        %v1226 = vld [vmem:[%s228 + $0x370] sm:$0xff]
        %v1227 = vld [vmem:[%s228 + $0x378] sm:$0xff]
        %v1228 = vld [vmem:[%s228 + $0x380] sm:$0xff]
        %v1229 = vld [vmem:[%s228 + $0x388] sm:$0xff]
        %v1230 = vld [vmem:[%s228 + $0x390] sm:$0xff]
        %v1231 = vld [vmem:[%s228 + $0x398] sm:$0xff]
        %v1232 = vld [vmem:[%s228 + $0x3a0] sm:$0xff]
        %v1233 = vld [vmem:[%s228 + $0x3a8] sm:$0xff]
        %v1234 = vld [vmem:[%s228 + $0x3b0] sm:$0xff]
        %v1235 = vld [vmem:[%s228 + $0x3b8] sm:$0xff]
        %v1236 = vld [vmem:[%s228 + $0x3c0] sm:$0xff]
        %v1237 = vld [vmem:[%s228 + $0x3c8] sm:$0xff]
        %v1238 = vld [vmem:[%s228 + $0x3d0] sm:$0xff]
        %v1239 = vld [vmem:[%s228 + $0x3d8] sm:$0xff]
        %v1240 = vld [vmem:[%s228 + $0x3e0] sm:$0xff]
        %v1241 = vld [vmem:[%s228 + $0x3e8] sm:$0xff]
        %v1242 = vld [vmem:[%s228 + $0x3f0] sm:$0xff]
        %v1243 = vld [vmem:[%s228 + $0x3f8] sm:$0xff]
        %v1244 = vld [vmem:[%s228 + $0x400] sm:$0xff]
        %v1245 = vld [vmem:[%s228 + $0x408] sm:$0xff]
        %v1246 = vld [vmem:[%s228 + $0x410] sm:$0xff]
        %v1247 = vld [vmem:[%s228 + $0x418] sm:$0xff]
        %v1248 = vld [vmem:[%s228 + $0x420] sm:$0xff]
        %v1249 = vld [vmem:[%s228 + $0x428] sm:$0xff]
        %v1250 = vld [vmem:[%s228 + $0x430] sm:$0xff]
        %v1251 = vld [vmem:[%s228 + $0x438] sm:$0xff]
        %v1252 = vld [vmem:[%s228 + $0x440] sm:$0xff]
        %v1253 = vld [vmem:[%s228 + $0x448] sm:$0xff]
        %v1254 = vld [vmem:[%s228 + $0x450] sm:$0xff]
        %v1255 = vld [vmem:[%s228 + $0x458] sm:$0xff]
        %v1256 = vld [vmem:[%s228 + $0x460] sm:$0xff]
        %v1257 = vld [vmem:[%s228 + $0x468] sm:$0xff]
        %v1258 = vld [vmem:[%s228 + $0x470] sm:$0xff]
        %v1259 = vld [vmem:[%s228 + $0x478] sm:$0xff]
        %v1260 = vld [vmem:[%s228 + $0x480] sm:$0xff]
        %v1261 = vld [vmem:[%s228 + $0x488] sm:$0xff]
        %v1262 = vld [vmem:[%s228 + $0x490] sm:$0xff]
        %v1263 = vld [vmem:[%s228 + $0x498] sm:$0xff]
        %v1264 = vld [vmem:[%s228 + $0x4a0] sm:$0xff]
        %v1265 = vld [vmem:[%s228 + $0x4a8] sm:$0xff]
        %v1266 = vld [vmem:[%s228 + $0x4b0] sm:$0xff]
        %v1267 = vld [vmem:[%s228 + $0x4b8] sm:$0xff]
        %v1268 = vld [vmem:[%s228 + $0x4c0] sm:$0xff]
        %v1269 = vld [vmem:[%s228 + $0x4c8] sm:$0xff]
        %v1270 = vld [vmem:[%s228 + $0x4d0] sm:$0xff]
        %v1271 = vld [vmem:[%s228 + $0x4d8] sm:$0xff]
        %v1272 = vld [vmem:[%s228 + $0x4e0] sm:$0xff]
        %v1273 = vld [vmem:[%s228 + $0x4e8] sm:$0xff]
        %v1274 = vld [vmem:[%s228 + $0x4f0] sm:$0xff]
        %v1275 = vld [vmem:[%s228 + $0x4f8] sm:$0xff]
        %v1276 = vld [vmem:[%s228 + $0x500] sm:$0xff]
        %v1277 = vld [vmem:[%s228 + $0x508] sm:$0xff]
        %v1278 = vld [vmem:[%s228 + $0x510] sm:$0xff]
        %v1279 = vld [vmem:[%s228 + $0x518] sm:$0xff]
        %v1280 = vld [vmem:[%s228 + $0x520] sm:$0xff]
        %v1281 = vld [vmem:[%s228 + $0x528] sm:$0xff]
        %v1282 = vld [vmem:[%s228 + $0x530] sm:$0xff]
        %v1283 = vld [vmem:[%s228 + $0x538] sm:$0xff]
        %v1284 = vld [vmem:[%s228 + $0x540] sm:$0xff]
        %v1285 = vld [vmem:[%s228 + $0x548] sm:$0xff]
        %v1286 = vld [vmem:[%s228 + $0x550] sm:$0xff]
        %v1287 = vld [vmem:[%s228 + $0x558] sm:$0xff]
        %v1288 = vld [vmem:[%s228 + $0x560] sm:$0xff]
        %v1289 = vld [vmem:[%s228 + $0x568] sm:$0xff]
        %v1290 = vld [vmem:[%s228 + $0x570] sm:$0xff]
        %v1291 = vld [vmem:[%s228 + $0x578] sm:$0xff]
        %v1292 = vld [vmem:[%s228 + $0x580] sm:$0xff]
        %v1293 = vld [vmem:[%s228 + $0x588] sm:$0xff]
        %v1294 = vld [vmem:[%s228 + $0x590] sm:$0xff]
        %v1295 = vld [vmem:[%s228 + $0x598] sm:$0xff]
        %v1296 = vld [vmem:[%s228 + $0x5a0] sm:$0xff]
        %v1297 = vld [vmem:[%s228 + $0x5a8] sm:$0xff]
        %v1298 = vld [vmem:[%s228 + $0x5b0] sm:$0xff]
        %v1299 = vld [vmem:[%s228 + $0x5b8] sm:$0xff]
        %v1300 = vld [vmem:[%s228 + $0x5c0] sm:$0xff]
        %v1301 = vld [vmem:[%s228 + $0x5c8] sm:$0xff]
        %v1302 = vld [vmem:[%s228 + $0x5d0] sm:$0xff]
        %v1303 = vld [vmem:[%s228 + $0x5d8] sm:$0xff]
        %v1304 = vld [vmem:[%s228 + $0x5e0] sm:$0xff]
        %v1305 = vld [vmem:[%s228 + $0x5e8] sm:$0xff]
        %v1306 = vld [vmem:[%s228 + $0x5f0] sm:$0xff]
        %v1307 = vld [vmem:[%s228 + $0x5f8] sm:$0xff]
        %v1308 = vld [vmem:[%s228 + $0x600] sm:$0xff]
        %v1309 = vld [vmem:[%s228 + $0x608] sm:$0xff]
        %v1310 = vld [vmem:[%s228 + $0x610] sm:$0xff]
        %v1311 = vld [vmem:[%s228 + $0x618] sm:$0xff]
        %v1312 = vld [vmem:[%s228 + $0x620] sm:$0xff]
        %v1313 = vld [vmem:[%s228 + $0x628] sm:$0xff]
        %v1314 = vld [vmem:[%s228 + $0x630] sm:$0xff]
        %v1315 = vld [vmem:[%s228 + $0x638] sm:$0xff]
        %v1316 = vld [vmem:[%s228 + $0x640] sm:$0xff]
        %v1317 = vld [vmem:[%s228 + $0x648] sm:$0xff]
        %v1318 = vld [vmem:[%s228 + $0x650] sm:$0xff]
        %v1319 = vld [vmem:[%s228 + $0x658] sm:$0xff]
        %v1320 = vld [vmem:[%s228 + $0x660] sm:$0xff]
        %v1321 = vld [vmem:[%s228 + $0x668] sm:$0xff]
        %v1322 = vld [vmem:[%s228 + $0x670] sm:$0xff]
        %v1323 = vld [vmem:[%s228 + $0x678] sm:$0xff]
        %v1324 = vld [vmem:[%s228 + $0x680] sm:$0xff]
        %v1325 = vld [vmem:[%s228 + $0x688] sm:$0xff]
        %v1326 = vld [vmem:[%s228 + $0x690] sm:$0xff]
        %v1327 = vld [vmem:[%s228 + $0x698] sm:$0xff]
        %v1328 = vld [vmem:[%s228 + $0x6a0] sm:$0xff]
        %v1329 = vld [vmem:[%s228 + $0x6a8] sm:$0xff]
        %v1330 = vld [vmem:[%s228 + $0x6b0] sm:$0xff]
        %v1331 = vld [vmem:[%s228 + $0x6b8] sm:$0xff]
        %v1332 = vld [vmem:[%s228 + $0x6c0] sm:$0xff]
        %v1333 = vld [vmem:[%s228 + $0x6c8] sm:$0xff]
        %v1334 = vld [vmem:[%s228 + $0x6d0] sm:$0xff]
        %v1335 = vld [vmem:[%s228 + $0x6d8] sm:$0xff]
        %v1336 = vld [vmem:[%s228 + $0x6e0] sm:$0xff]
        %v1337 = vld [vmem:[%s228 + $0x6e8] sm:$0xff]
        %v1338 = vld [vmem:[%s228 + $0x6f0] sm:$0xff]
        %v1339 = vld [vmem:[%s228 + $0x6f8] sm:$0xff]
        %v1340 = vld [vmem:[%s228 + $0x700] sm:$0xff]
        %v1341 = vld [vmem:[%s228 + $0x708] sm:$0xff]
        %v1342 = vld [vmem:[%s228 + $0x710] sm:$0xff]
        %v1343 = vld [vmem:[%s228 + $0x718] sm:$0xff]
        %v1344 = vld [vmem:[%s228 + $0x720] sm:$0xff]
        %v1345 = vld [vmem:[%s228 + $0x728] sm:$0xff]
        %v1346 = vld [vmem:[%s228 + $0x730] sm:$0xff]
        %v1347 = vld [vmem:[%s228 + $0x738] sm:$0xff]
        %v1348 = vld [vmem:[%s228 + $0x740] sm:$0xff]
        %v1349 = vld [vmem:[%s228 + $0x748] sm:$0xff]
        %v1350 = vld [vmem:[%s228 + $0x750] sm:$0xff]
        %v1351 = vld [vmem:[%s228 + $0x758] sm:$0xff]
        %v1352 = vld [vmem:[%s228 + $0x760] sm:$0xff]
        %v1353 = vld [vmem:[%s228 + $0x768] sm:$0xff]
        %v1354 = vld [vmem:[%s228 + $0x770] sm:$0xff]
        %v1355 = vld [vmem:[%s228 + $0x778] sm:$0xff]
        %v1356 = vld [vmem:[%s228 + $0x780] sm:$0xff]
        %v1357 = vld [vmem:[%s228 + $0x788] sm:$0xff]
        %v1358 = vld [vmem:[%s228 + $0x790] sm:$0xff]
        %v1359 = vld [vmem:[%s228 + $0x798] sm:$0xff]
        %v1360 = vld [vmem:[%s228 + $0x7a0] sm:$0xff]
        %v1361 = vld [vmem:[%s228 + $0x7a8] sm:$0xff]
        %v1362 = vld [vmem:[%s228 + $0x7b0] sm:$0xff]
        %v1363 = vld [vmem:[%s228 + $0x7b8] sm:$0xff]
        %v1364 = vld [vmem:[%s228 + $0x7c0] sm:$0xff]
        %v1365 = vld [vmem:[%s228 + $0x7c8] sm:$0xff]
        %v1366 = vld [vmem:[%s228 + $0x7d0] sm:$0xff]
        %v1367 = vld [vmem:[%s228 + $0x7d8] sm:$0xff]
        %v1368 = vld [vmem:[%s228 + $0x7e0] sm:$0xff]
        %v1369 = vld [vmem:[%s228 + $0x7e8] sm:$0xff]
        %v1370 = vld [vmem:[%s228 + $0x7f0] sm:$0xff]
        %v1371 = vld [vmem:[%s228 + $0x7f8] sm:$0xff]
        %1372 = vmatprep.subr.mxu0 0.0
        %1373 = vmatpush1.msra.mxu0 %v734
        %1374 = vmatprep.subr.mxu0 0.0
        %1375 = vmatpush1.msra.mxu0 %v739
        %1376 = vmatprep.subr.mxu0 0.0
        %1377 = vmatpush1.msra.mxu0 %v744
        %1378 = vmatprep.subr.mxu0 0.0
        %1379 = vmatpush1.msra.mxu0 %v749
        %1380 = vmatprep.subr.mxu0 0.0
        %1381 = vmatpush1.msra.mxu0 %v754
        %1382 = vmatprep.subr.mxu0 0.0
        %1383 = vmatpush1.msra.mxu0 %v759
        %1384 = vmatprep.subr.mxu0 0.0
        %1385 = vmatpush1.msra.mxu0 %v764
        %1386 = vmatprep.subr.mxu0 0.0
        %1387 = vmatpush1.msra.mxu0 %v769
        %1388 = vmatprep.subr.mxu0 0.0
        %1389 = vmatpush1.msra.mxu0 %v774
        %1390 = vmatprep.subr.mxu0 0.0
        %1391 = vmatpush1.msra.mxu0 %v779
        %1392 = vmatprep.subr.mxu0 0.0
        %1393 = vmatpush1.msra.mxu0 %v784
        %1394 = vmatprep.subr.mxu0 0.0
        %1395 = vmatpush1.msra.mxu0 %v789
        %1396 = vmatprep.subr.mxu0 0.0
        %1397 = vmatpush1.msra.mxu0 %v794
        %1398 = vmatprep.subr.mxu0 0.0
        %1399 = vmatpush1.msra.mxu0 %v799
        %1400 = vmatprep.subr.mxu0 0.0
        %1401 = vmatpush1.msra.mxu0 %v804
        %1402 = vmatprep.subr.mxu0 0.0
        %1403 = vmatpush1.msra.mxu0 %v809
        %1404 = vmatprep.subr.mxu0 0.0
        %1405 = vmatpush1.msra.mxu0 %v814
        %1406 = vmatprep.subr.mxu0 0.0
        %1407 = vmatpush1.msra.mxu0 %v819
        %1408 = vmatprep.subr.mxu0 0.0
        %1409 = vmatpush1.msra.mxu0 %v824
        %1410 = vmatprep.subr.mxu0 0.0
        %1411 = vmatpush1.msra.mxu0 %v829
        %1412 = vmatprep.subr.mxu0 0.0
        %1413 = vmatpush1.msra.mxu0 %v834
        %1414 = vmatprep.subr.mxu0 0.0
        %1415 = vmatpush1.msra.mxu0 %v839
        %1416 = vmatprep.subr.mxu0 0.0
        %1417 = vmatpush1.msra.mxu0 %v844
        %1418 = vmatprep.subr.mxu0 0.0
        %1419 = vmatpush1.msra.mxu0 %v849
        %1420 = vmatprep.subr.mxu0 0.0
        %1421 = vmatpush1.msra.mxu0 %v854
        %1422 = vmatprep.subr.mxu0 0.0
        %1423 = vmatpush1.msra.mxu0 %v859
        %1424 = vmatprep.subr.mxu0 0.0
        %1425 = vmatpush1.msra.mxu0 %v864
        %1426 = vmatprep.subr.mxu0 0.0
        %1427 = vmatpush1.msra.mxu0 %v869
        %1428 = vmatprep.subr.mxu0 0.0
        %1429 = vmatpush1.msra.mxu0 %v874
        %1430 = vmatprep.subr.mxu0 0.0
        %1431 = vmatpush1.msra.mxu0 %v879
        %1432 = vmatprep.subr.mxu0 0.0
        %1433 = vmatpush1.msra.mxu0 %v884
        %1434 = vmatprep.subr.mxu0 0.0
        %1435 = vmatpush1.msra.mxu0 %v889
        %1436 = vmatprep.mubr.f32.mxu0 %v1117
        %1437 = vmatmul.mubr.f32.gmra.mrb[0].mxu0 %v1116
        %v1438 = vpop.f32.mrb[0].mxu0
        %v1439 = vadd.f32 0.0, %v1438
        %v1440 = vpop.f32.mrb[0].mxu0
        %1441 = vmatprep.mubr.f32.mxu0 %v1121
        %1442 = vmatmul.mubr.f32.gmra.mrb[0].mxu0 %v1120
        %v1443 = vpop.f32.mrb[0].mxu0
        %v1444 = vadd.f32 0.0, %v1443
        %v1445 = vpop.f32.mrb[0].mxu0
        %1446 = vmatprep.mubr.f32.mxu0 %v1125
        %1447 = vmatmul.mubr.f32.gmra.mrb[0].mxu0 %v1124
        %v1448 = vpop.f32.mrb[0].mxu0
        %v1449 = vadd.f32 0.0, %v1448
        %v1450 = vpop.f32.mrb[0].mxu0
        %1451 = vmatprep.mubr.f32.mxu0 %v1129
        %1452 = vmatmul.mubr.f32.gmra.mrb[0].mxu0 %v1128
        %v1453 = vpop.f32.mrb[0].mxu0
        %v1454 = vadd.f32 0.0, %v1453
        %v1455 = vpop.f32.mrb[0].mxu0
        %1456 = vmatprep.mubr.f32.mxu0 %v1133
        %1457 = vmatmul.mubr.f32.gmra.mrb[0].mxu0 %v1132
        %v1458 = vpop.f32.mrb[0].mxu0
        %v1459 = vadd.f32 0.0, %v1458
        %v1460 = vpop.f32.mrb[0].mxu0
        %1461 = vmatprep.mubr.f32.mxu0 %v1137
        %1462 = vmatmul.mubr.f32.gmra.mrb[0].mxu0 %v1136
        %v1463 = vpop.f32.mrb[0].mxu0
        %v1464 = vadd.f32 0.0, %v1463
        %v1465 = vpop.f32.mrb[0].mxu0
        %1466 = vmatprep.mubr.f32.mxu0 %v1141
        %1467 = vmatmul.mubr.f32.gmra.mrb[0].mxu0 %v1140
        %v1468 = vpop.f32.mrb[0].mxu0
        %v1469 = vadd.f32 0.0, %v1468
        %v1470 = vpop.f32.mrb[0].mxu0
        %1471 = vmatprep.mubr.f32.mxu0 %v1145
        %1472 = vmatmul.mubr.f32.gmra.mrb[0].mxu0 %v1144
        %v1473 = vpop.f32.mrb[0].mxu0
        %v1474 = vadd.f32 0.0, %v1473
        %v1475 = vpop.f32.mrb[0].mxu0
        %1476 = vmatprep.mubr.f32.mxu0 %v1149
        %1477 = vmatmul.mubr.f32.gmra.mrb[0].mxu0 %v1148
        %v1478 = vpop.f32.mrb[0].mxu0
        %v1479 = vadd.f32 0.0, %v1478
        %v1480 = vpop.f32.mrb[0].mxu0
        %1481 = vmatprep.mubr.f32.mxu0 %v1153
        %1482 = vmatmul.mubr.f32.gmra.mrb[0].mxu0 %v1152
        %v1483 = vpop.f32.mrb[0].mxu0
        %v1484 = vadd.f32 0.0, %v1483
        %v1485 = vpop.f32.mrb[0].mxu0
        %1486 = vmatprep.mubr.f32.mxu0 %v1157
        %1487 = vmatmul.mubr.f32.gmra.mrb[0].mxu0 %v1156
        %v1488 = vpop.f32.mrb[0].mxu0
        %v1489 = vadd.f32 0.0, %v1488
        %v1490 = vpop.f32.mrb[0].mxu0
        %1491 = vmatprep.mubr.f32.mxu0 %v1161
        %1492 = vmatmul.mubr.f32.gmra.mrb[0].mxu0 %v1160
        %v1493 = vpop.f32.mrb[0].mxu0
        %v1494 = vadd.f32 0.0, %v1493
        %v1495 = vpop.f32.mrb[0].mxu0
        %1496 = vmatprep.mubr.f32.mxu0 %v1165
        %1497 = vmatmul.mubr.f32.gmra.mrb[0].mxu0 %v1164
        %v1498 = vpop.f32.mrb[0].mxu0
        %v1499 = vadd.f32 0.0, %v1498
        %v1500 = vpop.f32.mrb[0].mxu0
        %1501 = vmatprep.mubr.f32.mxu0 %v1169
        %1502 = vmatmul.mubr.f32.gmra.mrb[0].mxu0 %v1168
        %v1503 = vpop.f32.mrb[0].mxu0
        %v1504 = vadd.f32 0.0, %v1503
        %v1505 = vpop.f32.mrb[0].mxu0
        %1506 = vmatprep.mubr.f32.mxu0 %v1173
        %1507 = vmatmul.mubr.f32.gmra.mrb[0].mxu0 %v1172
        %v1508 = vpop.f32.mrb[0].mxu0
        %v1509 = vadd.f32 0.0, %v1508
        %v1510 = vpop.f32.mrb[0].mxu0
        %1511 = vmatprep.mubr.f32.mxu0 %v1177
        %1512 = vmatmul.mubr.f32.gmra.mrb[0].mxu0 %v1176
        %v1513 = vpop.f32.mrb[0].mxu0
        %v1514 = vadd.f32 0.0, %v1513
        %v1515 = vpop.f32.mrb[0].mxu0
        %1516 = vmatprep.mubr.f32.mxu0 %v1181
        %1517 = vmatmul.mubr.f32.gmra.mrb[0].mxu0 %v1180
        %v1518 = vpop.f32.mrb[0].mxu0
        %v1519 = vadd.f32 0.0, %v1518
        %v1520 = vpop.f32.mrb[0].mxu0
        %1521 = vmatprep.mubr.f32.mxu0 %v1185
        %1522 = vmatmul.mubr.f32.gmra.mrb[0].mxu0 %v1184
        %v1523 = vpop.f32.mrb[0].mxu0
        %v1524 = vadd.f32 0.0, %v1523
        %v1525 = vpop.f32.mrb[0].mxu0
        %1526 = vmatprep.mubr.f32.mxu0 %v1189
        %1527 = vmatmul.mubr.f32.gmra.mrb[0].mxu0 %v1188
        %v1528 = vpop.f32.mrb[0].mxu0
        %v1529 = vadd.f32 0.0, %v1528
        %v1530 = vpop.f32.mrb[0].mxu0
        %1531 = vmatprep.mubr.f32.mxu0 %v1193
        %1532 = vmatmul.mubr.f32.gmra.mrb[0].mxu0 %v1192
        %v1533 = vpop.f32.mrb[0].mxu0
        %v1534 = vadd.f32 0.0, %v1533
        %v1535 = vpop.f32.mrb[0].mxu0
        %1536 = vmatprep.mubr.f32.mxu0 %v1197
        %1537 = vmatmul.mubr.f32.gmra.mrb[0].mxu0 %v1196
        %v1538 = vpop.f32.mrb[0].mxu0
        %v1539 = vadd.f32 0.0, %v1538
        %v1540 = vpop.f32.mrb[0].mxu0
        %1541 = vmatprep.mubr.f32.mxu0 %v1201
        %1542 = vmatmul.mubr.f32.gmra.mrb[0].mxu0 %v1200
        %v1543 = vpop.f32.mrb[0].mxu0
        %v1544 = vadd.f32 0.0, %v1543
        %v1545 = vpop.f32.mrb[0].mxu0
        %1546 = vmatprep.mubr.f32.mxu0 %v1205
        %1547 = vmatmul.mubr.f32.gmra.mrb[0].mxu0 %v1204
        %v1548 = vpop.f32.mrb[0].mxu0
        %v1549 = vadd.f32 0.0, %v1548
        %v1550 = vpop.f32.mrb[0].mxu0
        %1551 = vmatprep.mubr.f32.mxu0 %v1209
        %1552 = vmatmul.mubr.f32.gmra.mrb[0].mxu0 %v1208
        %v1553 = vpop.f32.mrb[0].mxu0
        %v1554 = vadd.f32 0.0, %v1553
        %v1555 = vpop.f32.mrb[0].mxu0
        %1556 = vmatprep.mubr.f32.mxu0 %v1213
        %1557 = vmatmul.mubr.f32.gmra.mrb[0].mxu0 %v1212
        %v1558 = vpop.f32.mrb[0].mxu0
        %v1559 = vadd.f32 0.0, %v1558
        %v1560 = vpop.f32.mrb[0].mxu0
        %1561 = vmatprep.mubr.f32.mxu0 %v1217
        %1562 = vmatmul.mubr.f32.gmra.mrb[0].mxu0 %v1216
        %v1563 = vpop.f32.mrb[0].mxu0
        %v1564 = vadd.f32 0.0, %v1563
        %v1565 = vpop.f32.mrb[0].mxu0
        %1566 = vmatprep.mubr.f32.mxu0 %v1221
        %1567 = vmatmul.mubr.f32.gmra.mrb[0].mxu0 %v1220
        %v1568 = vpop.f32.mrb[0].mxu0
        %v1569 = vadd.f32 0.0, %v1568
        %v1570 = vpop.f32.mrb[0].mxu0
        %1571 = vmatprep.mubr.f32.mxu0 %v1225
        %1572 = vmatmul.mubr.f32.gmra.mrb[0].mxu0 %v1224
        %v1573 = vpop.f32.mrb[0].mxu0
        %v1574 = vadd.f32 0.0, %v1573
        %v1575 = vpop.f32.mrb[0].mxu0
        %1576 = vmatprep.mubr.f32.mxu0 %v1229
        %1577 = vmatmul.mubr.f32.gmra.mrb[0].mxu0 %v1228
        %v1578 = vpop.f32.mrb[0].mxu0
        %v1579 = vadd.f32 0.0, %v1578
        %v1580 = vpop.f32.mrb[0].mxu0
        %1581 = vmatprep.mubr.f32.mxu0 %v1233
        %1582 = vmatmul.mubr.f32.gmra.mrb[0].mxu0 %v1232
        %v1583 = vpop.f32.mrb[0].mxu0
        %v1584 = vadd.f32 0.0, %v1583
        %v1585 = vpop.f32.mrb[0].mxu0
        %1586 = vmatprep.mubr.f32.mxu0 %v1237
        %1587 = vmatmul.mubr.f32.gmra.mrb[0].mxu0 %v1236
        %v1588 = vpop.f32.mrb[0].mxu0
        %v1589 = vadd.f32 0.0, %v1588
        %v1590 = vpop.f32.mrb[0].mxu0
        %1591 = vmatprep.mubr.f32.mxu0 %v1241
        %1592 = vmatmul.mubr.f32.gmra.mrb[0].mxu0 %v1240
        %v1593 = vpop.f32.mrb[0].mxu0
        %v1594 = vadd.f32 0.0, %v1593
        %v1595 = vpop.f32.mrb[0].mxu0
        %1596 = vmatprep.mubr.f32.mxu0 %v1245
        %1597 = vmatmul.mubr.f32.gmra.mrb[0].mxu0 %v1244
        %v1598 = vpop.f32.mrb[0].mxu0
        %v1599 = vadd.f32 0.0, %v1598
        %v1600 = vpop.f32.mrb[0].mxu0
        %1601 = vmatprep.mubr.f32.mxu0 %v1249
        %1602 = vmatmul.mubr.f32.gmra.mrb[0].mxu0 %v1248
        %v1603 = vpop.f32.mrb[0].mxu0
        %v1604 = vadd.f32 0.0, %v1603
        %v1605 = vpop.f32.mrb[0].mxu0
        %1606 = vmatprep.mubr.f32.mxu0 %v1253
        %1607 = vmatmul.mubr.f32.gmra.mrb[0].mxu0 %v1252
        %v1608 = vpop.f32.mrb[0].mxu0
        %v1609 = vadd.f32 0.0, %v1608
        %v1610 = vpop.f32.mrb[0].mxu0
        %1611 = vmatprep.mubr.f32.mxu0 %v1257
        %1612 = vmatmul.mubr.f32.gmra.mrb[0].mxu0 %v1256
        %v1613 = vpop.f32.mrb[0].mxu0
        %v1614 = vadd.f32 0.0, %v1613
        %v1615 = vpop.f32.mrb[0].mxu0
        %1616 = vmatprep.mubr.f32.mxu0 %v1261
        %1617 = vmatmul.mubr.f32.gmra.mrb[0].mxu0 %v1260
        %v1618 = vpop.f32.mrb[0].mxu0
        %v1619 = vadd.f32 0.0, %v1618
        %v1620 = vpop.f32.mrb[0].mxu0
        %1621 = vmatprep.mubr.f32.mxu0 %v1265
        %1622 = vmatmul.mubr.f32.gmra.mrb[0].mxu0 %v1264
        %v1623 = vpop.f32.mrb[0].mxu0
        %v1624 = vadd.f32 0.0, %v1623
        %v1625 = vpop.f32.mrb[0].mxu0
        %1626 = vmatprep.mubr.f32.mxu0 %v1269
        %1627 = vmatmul.mubr.f32.gmra.mrb[0].mxu0 %v1268
        %v1628 = vpop.f32.mrb[0].mxu0
        %v1629 = vadd.f32 0.0, %v1628
        %v1630 = vpop.f32.mrb[0].mxu0
        %1631 = vmatprep.mubr.f32.mxu0 %v1273
        %1632 = vmatmul.mubr.f32.gmra.mrb[0].mxu0 %v1272
        %v1633 = vpop.f32.mrb[0].mxu0
        %v1634 = vadd.f32 0.0, %v1633
        %v1635 = vpop.f32.mrb[0].mxu0
        %1636 = vmatprep.mubr.f32.mxu0 %v1277
        %1637 = vmatmul.mubr.f32.gmra.mrb[0].mxu0 %v1276
        %v1638 = vpop.f32.mrb[0].mxu0
        %v1639 = vadd.f32 0.0, %v1638
        %v1640 = vpop.f32.mrb[0].mxu0
        %1641 = vmatprep.mubr.f32.mxu0 %v1281
        %1642 = vmatmul.mubr.f32.gmra.mrb[0].mxu0 %v1280
        %v1643 = vpop.f32.mrb[0].mxu0
        %v1644 = vadd.f32 0.0, %v1643
        %v1645 = vpop.f32.mrb[0].mxu0
        %1646 = vmatprep.mubr.f32.mxu0 %v1285
        %1647 = vmatmul.mubr.f32.gmra.mrb[0].mxu0 %v1284
        %v1648 = vpop.f32.mrb[0].mxu0
        %v1649 = vadd.f32 0.0, %v1648
        %v1650 = vpop.f32.mrb[0].mxu0
        %1651 = vmatprep.mubr.f32.mxu0 %v1289
        %1652 = vmatmul.mubr.f32.gmra.mrb[0].mxu0 %v1288
        %v1653 = vpop.f32.mrb[0].mxu0
        %v1654 = vadd.f32 0.0, %v1653
        %v1655 = vpop.f32.mrb[0].mxu0
        %1656 = vmatprep.mubr.f32.mxu0 %v1293
        %1657 = vmatmul.mubr.f32.gmra.mrb[0].mxu0 %v1292
        %v1658 = vpop.f32.mrb[0].mxu0
        %v1659 = vadd.f32 0.0, %v1658
        %v1660 = vpop.f32.mrb[0].mxu0
        %1661 = vmatprep.mubr.f32.mxu0 %v1297
        %1662 = vmatmul.mubr.f32.gmra.mrb[0].mxu0 %v1296
        %v1663 = vpop.f32.mrb[0].mxu0
        %v1664 = vadd.f32 0.0, %v1663
        %v1665 = vpop.f32.mrb[0].mxu0
        %1666 = vmatprep.mubr.f32.mxu0 %v1301
        %1667 = vmatmul.mubr.f32.gmra.mrb[0].mxu0 %v1300
        %v1668 = vpop.f32.mrb[0].mxu0
        %v1669 = vadd.f32 0.0, %v1668
        %v1670 = vpop.f32.mrb[0].mxu0
        %1671 = vmatprep.mubr.f32.mxu0 %v1305
        %1672 = vmatmul.mubr.f32.gmra.mrb[0].mxu0 %v1304
        %v1673 = vpop.f32.mrb[0].mxu0
        %v1674 = vadd.f32 0.0, %v1673
        %v1675 = vpop.f32.mrb[0].mxu0
        %1676 = vmatprep.mubr.f32.mxu0 %v1309
        %1677 = vmatmul.mubr.f32.gmra.mrb[0].mxu0 %v1308
        %v1678 = vpop.f32.mrb[0].mxu0
        %v1679 = vadd.f32 0.0, %v1678
        %v1680 = vpop.f32.mrb[0].mxu0
        %1681 = vmatprep.mubr.f32.mxu0 %v1313
        %1682 = vmatmul.mubr.f32.gmra.mrb[0].mxu0 %v1312
        %v1683 = vpop.f32.mrb[0].mxu0
        %v1684 = vadd.f32 0.0, %v1683
        %v1685 = vpop.f32.mrb[0].mxu0
        %1686 = vmatprep.mubr.f32.mxu0 %v1317
        %1687 = vmatmul.mubr.f32.gmra.mrb[0].mxu0 %v1316
        %v1688 = vpop.f32.mrb[0].mxu0
        %v1689 = vadd.f32 0.0, %v1688
        %v1690 = vpop.f32.mrb[0].mxu0
        %1691 = vmatprep.mubr.f32.mxu0 %v1321
        %1692 = vmatmul.mubr.f32.gmra.mrb[0].mxu0 %v1320
        %v1693 = vpop.f32.mrb[0].mxu0
        %v1694 = vadd.f32 0.0, %v1693
        %v1695 = vpop.f32.mrb[0].mxu0
        %1696 = vmatprep.mubr.f32.mxu0 %v1325
        %1697 = vmatmul.mubr.f32.gmra.mrb[0].mxu0 %v1324
        %v1698 = vpop.f32.mrb[0].mxu0
        %v1699 = vadd.f32 0.0, %v1698
        %v1700 = vpop.f32.mrb[0].mxu0
        %1701 = vmatprep.mubr.f32.mxu0 %v1329
        %1702 = vmatmul.mubr.f32.gmra.mrb[0].mxu0 %v1328
        %v1703 = vpop.f32.mrb[0].mxu0
        %v1704 = vadd.f32 0.0, %v1703
        %v1705 = vpop.f32.mrb[0].mxu0
        %1706 = vmatprep.mubr.f32.mxu0 %v1333
        %1707 = vmatmul.mubr.f32.gmra.mrb[0].mxu0 %v1332
        %v1708 = vpop.f32.mrb[0].mxu0
        %v1709 = vadd.f32 0.0, %v1708
        %v1710 = vpop.f32.mrb[0].mxu0
        %1711 = vmatprep.mubr.f32.mxu0 %v1337
        %1712 = vmatmul.mubr.f32.gmra.mrb[0].mxu0 %v1336
        %v1713 = vpop.f32.mrb[0].mxu0
        %v1714 = vadd.f32 0.0, %v1713
        %v1715 = vpop.f32.mrb[0].mxu0
        %1716 = vmatprep.mubr.f32.mxu0 %v1341
        %1717 = vmatmul.mubr.f32.gmra.mrb[0].mxu0 %v1340
        %v1718 = vpop.f32.mrb[0].mxu0
        %v1719 = vadd.f32 0.0, %v1718
        %v1720 = vpop.f32.mrb[0].mxu0
        %1721 = vmatprep.mubr.f32.mxu0 %v1345
        %1722 = vmatmul.mubr.f32.gmra.mrb[0].mxu0 %v1344
        %v1723 = vpop.f32.mrb[0].mxu0
        %v1724 = vadd.f32 0.0, %v1723
        %v1725 = vpop.f32.mrb[0].mxu0
        %1726 = vmatprep.mubr.f32.mxu0 %v1349
        %1727 = vmatmul.mubr.f32.gmra.mrb[0].mxu0 %v1348
        %v1728 = vpop.f32.mrb[0].mxu0
        %v1729 = vadd.f32 0.0, %v1728
        %v1730 = vpop.f32.mrb[0].mxu0
        %1731 = vmatprep.mubr.f32.mxu0 %v1353
        %1732 = vmatmul.mubr.f32.gmra.mrb[0].mxu0 %v1352
        %v1733 = vpop.f32.mrb[0].mxu0
        %v1734 = vadd.f32 0.0, %v1733
        %v1735 = vpop.f32.mrb[0].mxu0
        %1736 = vmatprep.mubr.f32.mxu0 %v1357
        %1737 = vmatmul.mubr.f32.gmra.mrb[0].mxu0 %v1356
        %v1738 = vpop.f32.mrb[0].mxu0
        %v1739 = vadd.f32 0.0, %v1738
        %v1740 = vpop.f32.mrb[0].mxu0
        %1741 = vmatprep.mubr.f32.mxu0 %v1361
        %1742 = vmatmul.mubr.f32.gmra.mrb[0].mxu0 %v1360
        %v1743 = vpop.f32.mrb[0].mxu0
        %v1744 = vadd.f32 0.0, %v1743
        %v1745 = vpop.f32.mrb[0].mxu0
        %1746 = vmatprep.mubr.f32.mxu0 %v1365
        %1747 = vmatmul.mubr.f32.gmra.mrb[0].mxu0 %v1364
        %v1748 = vpop.f32.mrb[0].mxu0
        %v1749 = vadd.f32 0.0, %v1748
        %v1750 = vpop.f32.mrb[0].mxu0
        %1751 = vmatprep.mubr.f32.mxu0 %v1369
        %1752 = vmatmul.mubr.f32.gmra.mrb[0].mxu0 %v1368
        %v1753 = vpop.f32.mrb[0].mxu0
        %v1754 = vadd.f32 0.0, %v1753
        %v1755 = vpop.f32.mrb[0].mxu0
        %1756 = vdwg.mxu0
        %1757 = vmatprep.subr.mxu0 0.0
        %1758 = vmatpush1.msra.mxu0 %v894
        %1759 = vmatprep.subr.mxu0 0.0
        %1760 = vmatpush1.msra.mxu0 %v899
        %1761 = vmatprep.subr.mxu0 0.0
        %1762 = vmatpush1.msra.mxu0 %v904
        %1763 = vmatprep.subr.mxu0 0.0
        %1764 = vmatpush1.msra.mxu0 %v909
        %1765 = vmatprep.subr.mxu0 0.0
        %1766 = vmatpush1.msra.mxu0 %v914
        %1767 = vmatprep.subr.mxu0 0.0
        %1768 = vmatpush1.msra.mxu0 %v919
        %1769 = vmatprep.subr.mxu0 0.0
        %1770 = vmatpush1.msra.mxu0 %v924
        %1771 = vmatprep.subr.mxu0 0.0
        %1772 = vmatpush1.msra.mxu0 %v929
        %1773 = vmatprep.subr.mxu0 0.0
        %1774 = vmatpush1.msra.mxu0 %v934
        %1775 = vmatprep.subr.mxu0 0.0
        %1776 = vmatpush1.msra.mxu0 %v939
        %1777 = vmatprep.subr.mxu0 0.0
        %1778 = vmatpush1.msra.mxu0 %v944
        %1779 = vmatprep.subr.mxu0 0.0
        %1780 = vmatpush1.msra.mxu0 %v949
        %1781 = vmatprep.subr.mxu0 0.0
        %1782 = vmatpush1.msra.mxu0 %v954
        %1783 = vmatprep.subr.mxu0 0.0
        %1784 = vmatpush1.msra.mxu0 %v959
        %1785 = vmatprep.subr.mxu0 0.0
        %1786 = vmatpush1.msra.mxu0 %v964
        %1787 = vmatprep.subr.mxu0 0.0
        %1788 = vmatpush1.msra.mxu0 %v969
        %1789 = vmatprep.subr.mxu0 0.0
        %1790 = vmatpush1.msra.mxu0 %v974
        %1791 = vmatprep.subr.mxu0 0.0
        %1792 = vmatpush1.msra.mxu0 %v979
        %1793 = vmatprep.subr.mxu0 0.0
        %1794 = vmatpush1.msra.mxu0 %v984
        %1795 = vmatprep.subr.mxu0 0.0
        %1796 = vmatpush1.msra.mxu0 %v989
        %1797 = vmatprep.subr.mxu0 0.0
        %1798 = vmatpush1.msra.mxu0 %v994
        %1799 = vmatprep.subr.mxu0 0.0
        %1800 = vmatpush1.msra.mxu0 %v999
        %1801 = vmatprep.subr.mxu0 0.0
        %1802 = vmatpush1.msra.mxu0 %v1004
        %1803 = vmatprep.subr.mxu0 0.0
        %1804 = vmatpush1.msra.mxu0 %v1009
        %1805 = vmatprep.subr.mxu0 0.0
        %1806 = vmatpush1.msra.mxu0 %v1014
        %1807 = vmatprep.subr.mxu0 0.0
        %1808 = vmatpush1.msra.mxu0 %v1019
        %1809 = vmatprep.subr.mxu0 0.0
        %1810 = vmatpush1.msra.mxu0 %v1024
        %1811 = vmatprep.subr.mxu0 0.0
        %1812 = vmatpush1.msra.mxu0 %v1029
        %1813 = vmatprep.subr.mxu0 0.0
        %1814 = vmatpush1.msra.mxu0 %v1034
        %1815 = vmatprep.subr.mxu0 0.0
        %1816 = vmatpush1.msra.mxu0 %v1039
        %1817 = vmatprep.subr.mxu0 0.0
        %1818 = vmatpush1.msra.mxu0 %v1044
        %1819 = vmatprep.subr.mxu0 0.0
        %1820 = vmatpush1.msra.mxu0 %v1049
        %1821 = vmatprep.mubr.f32.mxu0 %v1119
        %1822 = vmatmul.mubr.f32.gmra.mrb[0].mxu0 %v1118
        %v1823 = vpop.f32.mrb[0].mxu0
        %v1824 = vadd.f32 %v1439, %v1823
        %v1825 = vpop.f32.mrb[0].mxu0
        %1826 = vmatprep.mubr.f32.mxu0 %v1123
        %1827 = vmatmul.mubr.f32.gmra.mrb[0].mxu0 %v1122
        %v1828 = vpop.f32.mrb[0].mxu0
        %v1829 = vadd.f32 %v1444, %v1828
        %v1830 = vpop.f32.mrb[0].mxu0
        %1831 = vmatprep.mubr.f32.mxu0 %v1127
        %1832 = vmatmul.mubr.f32.gmra.mrb[0].mxu0 %v1126
        %v1833 = vpop.f32.mrb[0].mxu0
        %v1834 = vadd.f32 %v1449, %v1833
        %v1835 = vpop.f32.mrb[0].mxu0
        %1836 = vmatprep.mubr.f32.mxu0 %v1131
        %1837 = vmatmul.mubr.f32.gmra.mrb[0].mxu0 %v1130
        %v1838 = vpop.f32.mrb[0].mxu0
        %v1839 = vadd.f32 %v1454, %v1838
        %v1840 = vpop.f32.mrb[0].mxu0
        %1841 = vmatprep.mubr.f32.mxu0 %v1135
        %1842 = vmatmul.mubr.f32.gmra.mrb[0].mxu0 %v1134
        %v1843 = vpop.f32.mrb[0].mxu0
        %v1844 = vadd.f32 %v1459, %v1843
        %v1845 = vpop.f32.mrb[0].mxu0
        %1846 = vmatprep.mubr.f32.mxu0 %v1139
        %1847 = vmatmul.mubr.f32.gmra.mrb[0].mxu0 %v1138
        %v1848 = vpop.f32.mrb[0].mxu0
        %v1849 = vadd.f32 %v1464, %v1848
        %v1850 = vpop.f32.mrb[0].mxu0
        %1851 = vmatprep.mubr.f32.mxu0 %v1143
        %1852 = vmatmul.mubr.f32.gmra.mrb[0].mxu0 %v1142
        %v1853 = vpop.f32.mrb[0].mxu0
        %v1854 = vadd.f32 %v1469, %v1853
        %v1855 = vpop.f32.mrb[0].mxu0
        %1856 = vmatprep.mubr.f32.mxu0 %v1147
        %1857 = vmatmul.mubr.f32.gmra.mrb[0].mxu0 %v1146
        %v1858 = vpop.f32.mrb[0].mxu0
        %v1859 = vadd.f32 %v1474, %v1858
        %v1860 = vpop.f32.mrb[0].mxu0
        %1861 = vmatprep.mubr.f32.mxu0 %v1151
        %1862 = vmatmul.mubr.f32.gmra.mrb[0].mxu0 %v1150
        %v1863 = vpop.f32.mrb[0].mxu0
        %v1864 = vadd.f32 %v1479, %v1863
        %v1865 = vpop.f32.mrb[0].mxu0
        %1866 = vmatprep.mubr.f32.mxu0 %v1155
        %1867 = vmatmul.mubr.f32.gmra.mrb[0].mxu0 %v1154
        %v1868 = vpop.f32.mrb[0].mxu0
        %v1869 = vadd.f32 %v1484, %v1868
        %v1870 = vpop.f32.mrb[0].mxu0
        %1871 = vmatprep.mubr.f32.mxu0 %v1159
        %1872 = vmatmul.mubr.f32.gmra.mrb[0].mxu0 %v1158
        %v1873 = vpop.f32.mrb[0].mxu0
        %v1874 = vadd.f32 %v1489, %v1873
        %v1875 = vpop.f32.mrb[0].mxu0
        %1876 = vmatprep.mubr.f32.mxu0 %v1163
        %1877 = vmatmul.mubr.f32.gmra.mrb[0].mxu0 %v1162
        %v1878 = vpop.f32.mrb[0].mxu0
        %v1879 = vadd.f32 %v1494, %v1878
        %v1880 = vpop.f32.mrb[0].mxu0
        %1881 = vmatprep.mubr.f32.mxu0 %v1167
        %1882 = vmatmul.mubr.f32.gmra.mrb[0].mxu0 %v1166
        %v1883 = vpop.f32.mrb[0].mxu0
        %v1884 = vadd.f32 %v1499, %v1883
        %v1885 = vpop.f32.mrb[0].mxu0
        %1886 = vmatprep.mubr.f32.mxu0 %v1171
        %1887 = vmatmul.mubr.f32.gmra.mrb[0].mxu0 %v1170
        %v1888 = vpop.f32.mrb[0].mxu0
        %v1889 = vadd.f32 %v1504, %v1888
        %v1890 = vpop.f32.mrb[0].mxu0
        %1891 = vmatprep.mubr.f32.mxu0 %v1175
        %1892 = vmatmul.mubr.f32.gmra.mrb[0].mxu0 %v1174
        %v1893 = vpop.f32.mrb[0].mxu0
        %v1894 = vadd.f32 %v1509, %v1893
        %v1895 = vpop.f32.mrb[0].mxu0
        %1896 = vmatprep.mubr.f32.mxu0 %v1179
        %1897 = vmatmul.mubr.f32.gmra.mrb[0].mxu0 %v1178
        %v1898 = vpop.f32.mrb[0].mxu0
        %v1899 = vadd.f32 %v1514, %v1898
        %v1900 = vpop.f32.mrb[0].mxu0
        %1901 = vmatprep.mubr.f32.mxu0 %v1183
        %1902 = vmatmul.mubr.f32.gmra.mrb[0].mxu0 %v1182
        %v1903 = vpop.f32.mrb[0].mxu0
        %v1904 = vadd.f32 %v1519, %v1903
        %v1905 = vpop.f32.mrb[0].mxu0
        %1906 = vmatprep.mubr.f32.mxu0 %v1187
        %1907 = vmatmul.mubr.f32.gmra.mrb[0].mxu0 %v1186
        %v1908 = vpop.f32.mrb[0].mxu0
        %v1909 = vadd.f32 %v1524, %v1908
        %v1910 = vpop.f32.mrb[0].mxu0
        %1911 = vmatprep.mubr.f32.mxu0 %v1191
        %1912 = vmatmul.mubr.f32.gmra.mrb[0].mxu0 %v1190
        %v1913 = vpop.f32.mrb[0].mxu0
        %v1914 = vadd.f32 %v1529, %v1913
        %v1915 = vpop.f32.mrb[0].mxu0
        %1916 = vmatprep.mubr.f32.mxu0 %v1195
        %1917 = vmatmul.mubr.f32.gmra.mrb[0].mxu0 %v1194
        %v1918 = vpop.f32.mrb[0].mxu0
        %v1919 = vadd.f32 %v1534, %v1918
        %v1920 = vpop.f32.mrb[0].mxu0
        %1921 = vmatprep.mubr.f32.mxu0 %v1199
        %1922 = vmatmul.mubr.f32.gmra.mrb[0].mxu0 %v1198
        %v1923 = vpop.f32.mrb[0].mxu0
        %v1924 = vadd.f32 %v1539, %v1923
        %v1925 = vpop.f32.mrb[0].mxu0
        %1926 = vmatprep.mubr.f32.mxu0 %v1203
        %1927 = vmatmul.mubr.f32.gmra.mrb[0].mxu0 %v1202
        %v1928 = vpop.f32.mrb[0].mxu0
        %v1929 = vadd.f32 %v1544, %v1928
        %v1930 = vpop.f32.mrb[0].mxu0
        %1931 = vmatprep.mubr.f32.mxu0 %v1207
        %1932 = vmatmul.mubr.f32.gmra.mrb[0].mxu0 %v1206
        %v1933 = vpop.f32.mrb[0].mxu0
        %v1934 = vadd.f32 %v1549, %v1933
        %v1935 = vpop.f32.mrb[0].mxu0
        %1936 = vmatprep.mubr.f32.mxu0 %v1211
        %1937 = vmatmul.mubr.f32.gmra.mrb[0].mxu0 %v1210
        %v1938 = vpop.f32.mrb[0].mxu0
        %v1939 = vadd.f32 %v1554, %v1938
        %v1940 = vpop.f32.mrb[0].mxu0
        %1941 = vmatprep.mubr.f32.mxu0 %v1215
        %1942 = vmatmul.mubr.f32.gmra.mrb[0].mxu0 %v1214
        %v1943 = vpop.f32.mrb[0].mxu0
        %v1944 = vadd.f32 %v1559, %v1943
        %v1945 = vpop.f32.mrb[0].mxu0
        %1946 = vmatprep.mubr.f32.mxu0 %v1219
        %1947 = vmatmul.mubr.f32.gmra.mrb[0].mxu0 %v1218
        %v1948 = vpop.f32.mrb[0].mxu0
        %v1949 = vadd.f32 %v1564, %v1948
        %v1950 = vpop.f32.mrb[0].mxu0
        %1951 = vmatprep.mubr.f32.mxu0 %v1223
        %1952 = vmatmul.mubr.f32.gmra.mrb[0].mxu0 %v1222
        %v1953 = vpop.f32.mrb[0].mxu0
        %v1954 = vadd.f32 %v1569, %v1953
        %v1955 = vpop.f32.mrb[0].mxu0
        %1956 = vmatprep.mubr.f32.mxu0 %v1227
        %1957 = vmatmul.mubr.f32.gmra.mrb[0].mxu0 %v1226
        %v1958 = vpop.f32.mrb[0].mxu0
        %v1959 = vadd.f32 %v1574, %v1958
        %v1960 = vpop.f32.mrb[0].mxu0
        %1961 = vmatprep.mubr.f32.mxu0 %v1231
        %1962 = vmatmul.mubr.f32.gmra.mrb[0].mxu0 %v1230
        %v1963 = vpop.f32.mrb[0].mxu0
        %v1964 = vadd.f32 %v1579, %v1963
        %v1965 = vpop.f32.mrb[0].mxu0
        %1966 = vmatprep.mubr.f32.mxu0 %v1235
        %1967 = vmatmul.mubr.f32.gmra.mrb[0].mxu0 %v1234
        %v1968 = vpop.f32.mrb[0].mxu0
        %v1969 = vadd.f32 %v1584, %v1968
        %v1970 = vpop.f32.mrb[0].mxu0
        %1971 = vmatprep.mubr.f32.mxu0 %v1239
        %1972 = vmatmul.mubr.f32.gmra.mrb[0].mxu0 %v1238
        %v1973 = vpop.f32.mrb[0].mxu0
        %v1974 = vadd.f32 %v1589, %v1973
        %v1975 = vpop.f32.mrb[0].mxu0
        %1976 = vmatprep.mubr.f32.mxu0 %v1243
        %1977 = vmatmul.mubr.f32.gmra.mrb[0].mxu0 %v1242
        %v1978 = vpop.f32.mrb[0].mxu0
        %v1979 = vadd.f32 %v1594, %v1978
        %v1980 = vpop.f32.mrb[0].mxu0
        %1981 = vmatprep.mubr.f32.mxu0 %v1247
        %1982 = vmatmul.mubr.f32.gmra.mrb[0].mxu0 %v1246
        %v1983 = vpop.f32.mrb[0].mxu0
        %v1984 = vadd.f32 %v1599, %v1983
        %v1985 = vpop.f32.mrb[0].mxu0
        %1986 = vmatprep.mubr.f32.mxu0 %v1251
        %1987 = vmatmul.mubr.f32.gmra.mrb[0].mxu0 %v1250
        %v1988 = vpop.f32.mrb[0].mxu0
        %v1989 = vadd.f32 %v1604, %v1988
        %v1990 = vpop.f32.mrb[0].mxu0
        %1991 = vmatprep.mubr.f32.mxu0 %v1255
        %1992 = vmatmul.mubr.f32.gmra.mrb[0].mxu0 %v1254
        %v1993 = vpop.f32.mrb[0].mxu0
        %v1994 = vadd.f32 %v1609, %v1993
        %v1995 = vpop.f32.mrb[0].mxu0
        %1996 = vmatprep.mubr.f32.mxu0 %v1259
        %1997 = vmatmul.mubr.f32.gmra.mrb[0].mxu0 %v1258
        %v1998 = vpop.f32.mrb[0].mxu0
        %v1999 = vadd.f32 %v1614, %v1998
        %v2000 = vpop.f32.mrb[0].mxu0
        %2001 = vmatprep.mubr.f32.mxu0 %v1263
        %2002 = vmatmul.mubr.f32.gmra.mrb[0].mxu0 %v1262
        %v2003 = vpop.f32.mrb[0].mxu0
        %v2004 = vadd.f32 %v1619, %v2003
        %v2005 = vpop.f32.mrb[0].mxu0
        %2006 = vmatprep.mubr.f32.mxu0 %v1267
        %2007 = vmatmul.mubr.f32.gmra.mrb[0].mxu0 %v1266
        %v2008 = vpop.f32.mrb[0].mxu0
        %v2009 = vadd.f32 %v1624, %v2008
        %v2010 = vpop.f32.mrb[0].mxu0
        %2011 = vmatprep.mubr.f32.mxu0 %v1271
        %2012 = vmatmul.mubr.f32.gmra.mrb[0].mxu0 %v1270
        %v2013 = vpop.f32.mrb[0].mxu0
        %v2014 = vadd.f32 %v1629, %v2013
        %v2015 = vpop.f32.mrb[0].mxu0
        %2016 = vmatprep.mubr.f32.mxu0 %v1275
        %2017 = vmatmul.mubr.f32.gmra.mrb[0].mxu0 %v1274
        %v2018 = vpop.f32.mrb[0].mxu0
        %v2019 = vadd.f32 %v1634, %v2018
        %v2020 = vpop.f32.mrb[0].mxu0
        %2021 = vmatprep.mubr.f32.mxu0 %v1279
        %2022 = vmatmul.mubr.f32.gmra.mrb[0].mxu0 %v1278
        %v2023 = vpop.f32.mrb[0].mxu0
        %v2024 = vadd.f32 %v1639, %v2023
        %v2025 = vpop.f32.mrb[0].mxu0
        %2026 = vmatprep.mubr.f32.mxu0 %v1283
        %2027 = vmatmul.mubr.f32.gmra.mrb[0].mxu0 %v1282
        %v2028 = vpop.f32.mrb[0].mxu0
        %v2029 = vadd.f32 %v1644, %v2028
        %v2030 = vpop.f32.mrb[0].mxu0
        %2031 = vmatprep.mubr.f32.mxu0 %v1287
        %2032 = vmatmul.mubr.f32.gmra.mrb[0].mxu0 %v1286
        %v2033 = vpop.f32.mrb[0].mxu0
        %v2034 = vadd.f32 %v1649, %v2033
        %v2035 = vpop.f32.mrb[0].mxu0
        %2036 = vmatprep.mubr.f32.mxu0 %v1291
        %2037 = vmatmul.mubr.f32.gmra.mrb[0].mxu0 %v1290
        %v2038 = vpop.f32.mrb[0].mxu0
        %v2039 = vadd.f32 %v1654, %v2038
        %v2040 = vpop.f32.mrb[0].mxu0
        %2041 = vmatprep.mubr.f32.mxu0 %v1295
        %2042 = vmatmul.mubr.f32.gmra.mrb[0].mxu0 %v1294
        %v2043 = vpop.f32.mrb[0].mxu0
        %v2044 = vadd.f32 %v1659, %v2043
        %v2045 = vpop.f32.mrb[0].mxu0
        %2046 = vmatprep.mubr.f32.mxu0 %v1299
        %2047 = vmatmul.mubr.f32.gmra.mrb[0].mxu0 %v1298
        %v2048 = vpop.f32.mrb[0].mxu0
        %v2049 = vadd.f32 %v1664, %v2048
        %v2050 = vpop.f32.mrb[0].mxu0
        %2051 = vmatprep.mubr.f32.mxu0 %v1303
        %2052 = vmatmul.mubr.f32.gmra.mrb[0].mxu0 %v1302
        %v2053 = vpop.f32.mrb[0].mxu0
        %v2054 = vadd.f32 %v1669, %v2053
        %v2055 = vpop.f32.mrb[0].mxu0
        %2056 = vmatprep.mubr.f32.mxu0 %v1307
        %2057 = vmatmul.mubr.f32.gmra.mrb[0].mxu0 %v1306
        %v2058 = vpop.f32.mrb[0].mxu0
        %v2059 = vadd.f32 %v1674, %v2058
        %v2060 = vpop.f32.mrb[0].mxu0
        %2061 = vmatprep.mubr.f32.mxu0 %v1311
        %2062 = vmatmul.mubr.f32.gmra.mrb[0].mxu0 %v1310
        %v2063 = vpop.f32.mrb[0].mxu0
        %v2064 = vadd.f32 %v1679, %v2063
        %v2065 = vpop.f32.mrb[0].mxu0
        %2066 = vmatprep.mubr.f32.mxu0 %v1315
        %2067 = vmatmul.mubr.f32.gmra.mrb[0].mxu0 %v1314
        %v2068 = vpop.f32.mrb[0].mxu0
        %v2069 = vadd.f32 %v1684, %v2068
        %v2070 = vpop.f32.mrb[0].mxu0
        %2071 = vmatprep.mubr.f32.mxu0 %v1319
        %2072 = vmatmul.mubr.f32.gmra.mrb[0].mxu0 %v1318
        %v2073 = vpop.f32.mrb[0].mxu0
        %v2074 = vadd.f32 %v1689, %v2073
        %v2075 = vpop.f32.mrb[0].mxu0
        %2076 = vmatprep.mubr.f32.mxu0 %v1323
        %2077 = vmatmul.mubr.f32.gmra.mrb[0].mxu0 %v1322
        %v2078 = vpop.f32.mrb[0].mxu0
        %v2079 = vadd.f32 %v1694, %v2078
        %v2080 = vpop.f32.mrb[0].mxu0
        %2081 = vmatprep.mubr.f32.mxu0 %v1327
        %2082 = vmatmul.mubr.f32.gmra.mrb[0].mxu0 %v1326
        %v2083 = vpop.f32.mrb[0].mxu0
        %v2084 = vadd.f32 %v1699, %v2083
        %v2085 = vpop.f32.mrb[0].mxu0
        %2086 = vmatprep.mubr.f32.mxu0 %v1331
        %2087 = vmatmul.mubr.f32.gmra.mrb[0].mxu0 %v1330
        %v2088 = vpop.f32.mrb[0].mxu0
        %v2089 = vadd.f32 %v1704, %v2088
        %v2090 = vpop.f32.mrb[0].mxu0
        %2091 = vmatprep.mubr.f32.mxu0 %v1335
        %2092 = vmatmul.mubr.f32.gmra.mrb[0].mxu0 %v1334
        %v2093 = vpop.f32.mrb[0].mxu0
        %v2094 = vadd.f32 %v1709, %v2093
        %v2095 = vpop.f32.mrb[0].mxu0
        %2096 = vmatprep.mubr.f32.mxu0 %v1339
        %2097 = vmatmul.mubr.f32.gmra.mrb[0].mxu0 %v1338
        %v2098 = vpop.f32.mrb[0].mxu0
        %v2099 = vadd.f32 %v1714, %v2098
        %v2100 = vpop.f32.mrb[0].mxu0
        %2101 = vmatprep.mubr.f32.mxu0 %v1343
        %2102 = vmatmul.mubr.f32.gmra.mrb[0].mxu0 %v1342
        %v2103 = vpop.f32.mrb[0].mxu0
        %v2104 = vadd.f32 %v1719, %v2103
        %v2105 = vpop.f32.mrb[0].mxu0
        %2106 = vmatprep.mubr.f32.mxu0 %v1347
        %2107 = vmatmul.mubr.f32.gmra.mrb[0].mxu0 %v1346
        %v2108 = vpop.f32.mrb[0].mxu0
        %v2109 = vadd.f32 %v1724, %v2108
        %v2110 = vpop.f32.mrb[0].mxu0
        %2111 = vmatprep.mubr.f32.mxu0 %v1351
        %2112 = vmatmul.mubr.f32.gmra.mrb[0].mxu0 %v1350
        %v2113 = vpop.f32.mrb[0].mxu0
        %v2114 = vadd.f32 %v1729, %v2113
        %v2115 = vpop.f32.mrb[0].mxu0
        %2116 = vmatprep.mubr.f32.mxu0 %v1355
        %2117 = vmatmul.mubr.f32.gmra.mrb[0].mxu0 %v1354
        %v2118 = vpop.f32.mrb[0].mxu0
        %v2119 = vadd.f32 %v1734, %v2118
        %v2120 = vpop.f32.mrb[0].mxu0
        %2121 = vmatprep.mubr.f32.mxu0 %v1359
        %2122 = vmatmul.mubr.f32.gmra.mrb[0].mxu0 %v1358
        %v2123 = vpop.f32.mrb[0].mxu0
        %v2124 = vadd.f32 %v1739, %v2123
        %v2125 = vpop.f32.mrb[0].mxu0
        %2126 = vmatprep.mubr.f32.mxu0 %v1363
        %2127 = vmatmul.mubr.f32.gmra.mrb[0].mxu0 %v1362
        %v2128 = vpop.f32.mrb[0].mxu0
        %v2129 = vadd.f32 %v1744, %v2128
        %v2130 = vpop.f32.mrb[0].mxu0
        %2131 = vmatprep.mubr.f32.mxu0 %v1367
        %2132 = vmatmul.mubr.f32.gmra.mrb[0].mxu0 %v1366
        %v2133 = vpop.f32.mrb[0].mxu0
        %v2134 = vadd.f32 %v1749, %v2133
        %v2135 = vpop.f32.mrb[0].mxu0
        %2136 = vmatprep.mubr.f32.mxu0 %v1371
        %2137 = vmatmul.mubr.f32.gmra.mrb[0].mxu0 %v1370
        %v2138 = vpop.f32.mrb[0].mxu0
        %v2139 = vadd.f32 %v1754, %v2138
        %v2140 = vpop.f32.mrb[0].mxu0
        %2141 = vdwg.mxu0
        %v2142 = vadd.f32 %v1052, %v1824
        %v2143 = vadd.f32 %v1053, %v1829
        %v2144 = vadd.f32 %v1054, %v1834
        %v2145 = vadd.f32 %v1055, %v1839
        %v2146 = vadd.f32 %v1056, %v1844
        %v2147 = vadd.f32 %v1057, %v1849
        %v2148 = vadd.f32 %v1058, %v1854
        %v2149 = vadd.f32 %v1059, %v1859
        %v2150 = vadd.f32 %v1060, %v1864
        %v2151 = vadd.f32 %v1061, %v1869
        %v2152 = vadd.f32 %v1062, %v1874
        %v2153 = vadd.f32 %v1063, %v1879
        %v2154 = vadd.f32 %v1064, %v1884
        %v2155 = vadd.f32 %v1065, %v1889
        %v2156 = vadd.f32 %v1066, %v1894
        %v2157 = vadd.f32 %v1067, %v1899
        %v2158 = vadd.f32 %v1068, %v1904
        %v2159 = vadd.f32 %v1069, %v1909
        %v2160 = vadd.f32 %v1070, %v1914
        %v2161 = vadd.f32 %v1071, %v1919
        %v2162 = vadd.f32 %v1072, %v1924
        %v2163 = vadd.f32 %v1073, %v1929
        %v2164 = vadd.f32 %v1074, %v1934
        %v2165 = vadd.f32 %v1075, %v1939
        %v2166 = vadd.f32 %v1076, %v1944
        %v2167 = vadd.f32 %v1077, %v1949
        %v2168 = vadd.f32 %v1078, %v1954
        %v2169 = vadd.f32 %v1079, %v1959
        %v2170 = vadd.f32 %v1080, %v1964
        %v2171 = vadd.f32 %v1081, %v1969
        %v2172 = vadd.f32 %v1082, %v1974
        %v2173 = vadd.f32 %v1083, %v1979
        %v2174 = vadd.f32 %v1084, %v1984
        %v2175 = vadd.f32 %v1085, %v1989
        %v2176 = vadd.f32 %v1086, %v1994
        %v2177 = vadd.f32 %v1087, %v1999
        %v2178 = vadd.f32 %v1088, %v2004
        %v2179 = vadd.f32 %v1089, %v2009
        %v2180 = vadd.f32 %v1090, %v2014
        %v2181 = vadd.f32 %v1091, %v2019
        %v2182 = vadd.f32 %v1092, %v2024
        %v2183 = vadd.f32 %v1093, %v2029
        %v2184 = vadd.f32 %v1094, %v2034
        %v2185 = vadd.f32 %v1095, %v2039
        %v2186 = vadd.f32 %v1096, %v2044
        %v2187 = vadd.f32 %v1097, %v2049
        %v2188 = vadd.f32 %v1098, %v2054
        %v2189 = vadd.f32 %v1099, %v2059
        %v2190 = vadd.f32 %v1100, %v2064
        %v2191 = vadd.f32 %v1101, %v2069
        %v2192 = vadd.f32 %v1102, %v2074
        %v2193 = vadd.f32 %v1103, %v2079
        %v2194 = vadd.f32 %v1104, %v2084
        %v2195 = vadd.f32 %v1105, %v2089
        %v2196 = vadd.f32 %v1106, %v2094
        %v2197 = vadd.f32 %v1107, %v2099
        %v2198 = vadd.f32 %v1108, %v2104
        %v2199 = vadd.f32 %v1109, %v2109
        %v2200 = vadd.f32 %v1110, %v2114
        %v2201 = vadd.f32 %v1111, %v2119
        %v2202 = vadd.f32 %v1112, %v2124
        %v2203 = vadd.f32 %v1113, %v2129
        %v2204 = vadd.f32 %v1114, %v2134
        %v2205 = vadd.f32 %v1115, %v2139
        %2206 = vst [vmem:[%s261] sm:$0xff] %v2142
        %2207 = vst [vmem:[%s261 + $0x8] sm:$0xff] %v2143
        %2208 = vst [vmem:[%s261 + $0x10] sm:$0xff] %v2144
        %2209 = vst [vmem:[%s261 + $0x18] sm:$0xff] %v2145
        %2210 = vst [vmem:[%s261 + $0x20] sm:$0xff] %v2146
        %2211 = vst [vmem:[%s261 + $0x28] sm:$0xff] %v2147
        %2212 = vst [vmem:[%s261 + $0x30] sm:$0xff] %v2148
        %2213 = vst [vmem:[%s261 + $0x38] sm:$0xff] %v2149
        %2214 = vst [vmem:[%s261 + $0x40] sm:$0xff] %v2150
        %2215 = vst [vmem:[%s261 + $0x48] sm:$0xff] %v2151
        %2216 = vst [vmem:[%s261 + $0x50] sm:$0xff] %v2152
        %2217 = vst [vmem:[%s261 + $0x58] sm:$0xff] %v2153
        %2218 = vst [vmem:[%s261 + $0x60] sm:$0xff] %v2154
        %2219 = vst [vmem:[%s261 + $0x68] sm:$0xff] %v2155
        %2220 = vst [vmem:[%s261 + $0x70] sm:$0xff] %v2156
        %2221 = vst [vmem:[%s261 + $0x78] sm:$0xff] %v2157
        %2222 = vst [vmem:[%s261 + $0x80] sm:$0xff] %v2158
        %2223 = vst [vmem:[%s261 + $0x88] sm:$0xff] %v2159
        %2224 = vst [vmem:[%s261 + $0x90] sm:$0xff] %v2160
        %2225 = vst [vmem:[%s261 + $0x98] sm:$0xff] %v2161
        %2226 = vst [vmem:[%s261 + $0xa0] sm:$0xff] %v2162
        %2227 = vst [vmem:[%s261 + $0xa8] sm:$0xff] %v2163
        %2228 = vst [vmem:[%s261 + $0xb0] sm:$0xff] %v2164
        %2229 = vst [vmem:[%s261 + $0xb8] sm:$0xff] %v2165
        %2230 = vst [vmem:[%s261 + $0xc0] sm:$0xff] %v2166
        %2231 = vst [vmem:[%s261 + $0xc8] sm:$0xff] %v2167
        %2232 = vst [vmem:[%s261 + $0xd0] sm:$0xff] %v2168
        %2233 = vst [vmem:[%s261 + $0xd8] sm:$0xff] %v2169
        %2234 = vst [vmem:[%s261 + $0xe0] sm:$0xff] %v2170
        %2235 = vst [vmem:[%s261 + $0xe8] sm:$0xff] %v2171
        %2236 = vst [vmem:[%s261 + $0xf0] sm:$0xff] %v2172
        %2237 = vst [vmem:[%s261 + $0xf8] sm:$0xff] %v2173
        %2238 = vst [vmem:[%s261 + $0x100] sm:$0xff] %v2174
        %2239 = vst [vmem:[%s261 + $0x108] sm:$0xff] %v2175
        %2240 = vst [vmem:[%s261 + $0x110] sm:$0xff] %v2176
        %2241 = vst [vmem:[%s261 + $0x118] sm:$0xff] %v2177
        %2242 = vst [vmem:[%s261 + $0x120] sm:$0xff] %v2178
        %2243 = vst [vmem:[%s261 + $0x128] sm:$0xff] %v2179
        %2244 = vst [vmem:[%s261 + $0x130] sm:$0xff] %v2180
        %2245 = vst [vmem:[%s261 + $0x138] sm:$0xff] %v2181
        %2246 = vst [vmem:[%s261 + $0x140] sm:$0xff] %v2182
        %2247 = vst [vmem:[%s261 + $0x148] sm:$0xff] %v2183
        %2248 = vst [vmem:[%s261 + $0x150] sm:$0xff] %v2184
        %2249 = vst [vmem:[%s261 + $0x158] sm:$0xff] %v2185
        %2250 = vst [vmem:[%s261 + $0x160] sm:$0xff] %v2186
        %2251 = vst [vmem:[%s261 + $0x168] sm:$0xff] %v2187
        %2252 = vst [vmem:[%s261 + $0x170] sm:$0xff] %v2188
        %2253 = vst [vmem:[%s261 + $0x178] sm:$0xff] %v2189
        %2254 = vst [vmem:[%s261 + $0x180] sm:$0xff] %v2190
        %2255 = vst [vmem:[%s261 + $0x188] sm:$0xff] %v2191
        %2256 = vst [vmem:[%s261 + $0x190] sm:$0xff] %v2192
        %2257 = vst [vmem:[%s261 + $0x198] sm:$0xff] %v2193
        %2258 = vst [vmem:[%s261 + $0x1a0] sm:$0xff] %v2194
        %2259 = vst [vmem:[%s261 + $0x1a8] sm:$0xff] %v2195
        %2260 = vst [vmem:[%s261 + $0x1b0] sm:$0xff] %v2196
        %2261 = vst [vmem:[%s261 + $0x1b8] sm:$0xff] %v2197
        %2262 = vst [vmem:[%s261 + $0x1c0] sm:$0xff] %v2198
        %2263 = vst [vmem:[%s261 + $0x1c8] sm:$0xff] %v2199
        %2264 = vst [vmem:[%s261 + $0x1d0] sm:$0xff] %v2200
        %2265 = vst [vmem:[%s261 + $0x1d8] sm:$0xff] %v2201
        %2266 = vst [vmem:[%s261 + $0x1e0] sm:$0xff] %v2202
        %2267 = vst [vmem:[%s261 + $0x1e8] sm:$0xff] %v2203
        %2268 = vst [vmem:[%s261 + $0x1f0] sm:$0xff] %v2204
        %2269 = vst [vmem:[%s261 + $0x1f8] sm:$0xff] %v2205
        %s2270 = sand.u32 %s138, 1
        %s2271 = scalar_lea.sflag [#allocation4], %s2270
        %s2272 = sand.u32 %s138, 1
        %s2273 = smul.addr %s2272, 512
        %s2274 = scalar_lea.vmem [#allocation7], %s2273
        // Predicated region
        $region49: #{tpu_custom_call.1} parent=35 // pred_check
          %p2275 = pneg %p148
        $region50: #{tpu_custom_call.1} parent=35 // pred_check_branch
          %2277 = sbr.rel (%p2275) target = $region52
        $region51: #{tpu_custom_call.1} parent=35 // pred_region
          %s2278 = smul.u32 64, %s26
          %s2280 = ssub.s32 8192, 8192
          %2281 = vsyncadd %s2271, %s2280
          %s2282 = smul.addr %s2278, 128
          %s2283 = scalar_lea.hbm %s4, %s2282
          %s2284 = sshll.u32 %s2274, 4
          %s2285 = int_to_ptr.vmem [resolvable:$true] %s2284
          %2290 = dma.vmem_to_hbm [thread:$0]  %s2285, 8192, %s2283, %s2271, 128, 128, 8
        $region52: #{tpu_custom_call.1} parent=35 // pred_fallthru
          _
      $region36: #{tpu_custom_call.1} parent=5 // pred_fallthru
        _
      %p2291 = scmp.le.s32.totalorder 2, %s17
      // Predicated region
      $region53: #{tpu_custom_call.1} parent=5 // pred_check
        %p2292 = pneg %p2291
      $region54: #{tpu_custom_call.1} parent=5 // pred_check_branch
        %2294 = sbr.rel (%p2292) target = $region56
      $region55: #{tpu_custom_call.1} parent=5 // pred_region
        %s2295 = ssub.s32 %s17, 2
        // Predicated region
        $region57: #{tpu_custom_call.1} parent=55 // pred_check
          %p2296 = pneg %p154
        $region58: #{tpu_custom_call.1} parent=55 // pred_check_branch
          %2298 = sbr.rel (%p2296) target = $region60
        $region59: #{tpu_custom_call.1} parent=55 // pred_region
          %s2299 = sand.u32 %s139, 1
          %s2300 = scalar_lea.sflag [#allocation4], %s2299
          %s2301 = sand.u32 %s139, 1
          %s2302 = smul.addr %s2301, 512
          %s2303 = scalar_lea.vmem [#allocation7], %s2302
          %2304 = dma.done %s2300, 8192
        $region60: #{tpu_custom_call.1} parent=55 // pred_fallthru
          _
      $region56: #{tpu_custom_call.1} parent=5 // pred_fallthru
        _
    $region6: #{tpu_custom_call.1} parent=1 // loop_footer
      %s21 = sadd.s32 1, %s17
    $region7: #{tpu_custom_call.1} parent=1 // loop_footer_branch
      %16 = sbr.rel target = $region3
    $region8: #{tpu_custom_call.1} parent=1 // loop_exit
      _
    %2305 = vsyncpa [#allocation3], 1
    %s2306 = scalar_lea.sflag [#allocation3], 1
    %2307 = vsyncpa %s2306, 1
    %2308 = vsyncpa [#allocation6], 1
    %2309 = vsyncpa [#allocation4], 1
    %s2310 = scalar_lea.sflag [#allocation4], 1
    %2311 = vsyncpa %s2310, 1

</llo_original>
